<compile_context>
chip_gen: v5e
topology: v5e:2x2
jax: 0.10.0
libtpu: 0.0.40
codegen_flags: <defaults>
</compile_context>

<pallas_src>
import functools

import jax
import jax.numpy as jnp
from jax.experimental import pallas as pl
from jax.experimental.pallas import tpu as pltpu


def _round_up(n, m):
    return ((n + m - 1) // m) * m


def _pe_kernel(x_ref, o_ref, *, num_freq_bands, include_input):
    """Lane-dense positional encoding.

    x_ref: (C, TILE_N) input block (C = 3 coords on the sublane axis, N on lanes).
    o_ref: (d_out, TILE_N) output block; parts are written as sublane row groups in
           the same order as the PyTorch concat.
    """
    C = x_ref.shape[0]
    x = x_ref[...]                         # (C, TILE_N)
    xf = x.astype(jnp.float32)             # keep all math in f32 (v5e-safe)

    row = 0
    o_ref[0:C, :] = x.astype(o_ref.dtype)  # raw input
    row += C
    if include_input:
        o_ref[row:row + C, :] = x.astype(o_ref.dtype)  # matches PyTorch: x appears twice
        row += C

    for freq in range(1, num_freq_bands + 1):
        fx = jnp.float32(freq) * xf                    # VPU scale (free filler)
        o_ref[row:row + C, :] = jnp.sin(fx).astype(o_ref.dtype)   # EUP
        row += C
        o_ref[row:row + C, :] = jnp.cos(fx).astype(o_ref.dtype)   # EUP
        row += C


def positional_encoding(x, num_freq_bands=6, include_input=True, tile_n=8192):
    """x: (N, 3) float array -> (N, 3*(1 + include_input + 2*num_freq_bands))."""
    N, C = x.shape
    d_out = C * (1 + (1 if include_input else 0) + 2 * num_freq_bands)

    # Lane-dense view: coords on sublanes, points on lanes.
    xt = x.T                                        # (C, N)

    # Tile over N: multiple of 128 lanes, capped so the per-step VMEM footprint
    # (input pads 3->8 sublanes, output 42->48) stays small even on v7x's 64 MiB VMEM.
    tile = min(tile_n, _round_up(max(N, 1), 128))
    n_pad = _round_up(max(N, 1), tile)
    if n_pad != N:
        xt = jnp.pad(xt, ((0, 0), (0, n_pad - N)))  # zero-pad the tail tile

    kernel = functools.partial(
        _pe_kernel, num_freq_bands=num_freq_bands, include_input=include_input
    )

    out_t = pl.pallas_call(
        kernel,
        out_shape=jax.ShapeDtypeStruct((d_out, n_pad), x.dtype),
        grid=(n_pad // tile,),
        in_specs=[pl.BlockSpec((C, tile), lambda i: (0, i))],
        out_specs=pl.BlockSpec((d_out, tile), lambda i: (0, i)),
        compiler_params=pltpu.CompilerParams(
            dimension_semantics=("parallel",),
        ),
    )(xt)

    # Restore the module's (N, d_out) contract; consumers that can take (d_out, N)
    # directly (e.g. the following Linear's K-major operand) should skip this.
    return out_t[:, :N].T


def _reference(x, num_freq_bands=6, include_input=True):
    """Pure-JAX reference mirroring the PyTorch forward exactly."""
    parts = [x]
    if include_input:
        parts.append(x)
    for freq in range(1, num_freq_bands + 1):
        for fn in (jnp.sin, jnp.cos):
            parts.append(fn(freq * x))
    return jnp.concatenate(parts, axis=-1)


if __name__ == "__main__":
    key = jax.random.PRNGKey(0)

    # Small deterministic test: N 3D points.
    N = 8
    x = jax.random.normal(key, (N, 3), dtype=jnp.float32)
    out = jax.block_until_ready(positional_encoding(x, num_freq_bands=6, include_input=True))
    ref = _reference(x, num_freq_bands=6, include_input=True)
    assert out.shape == (N, 3 * (1 + 1 + 2 * 6)), out.shape            # (8, 42)
    assert jnp.allclose(out, ref, atol=1e-5, rtol=1e-5), "mismatch vs reference (N=8)"

    # Exercise the tiled / padded path (N not a multiple of 128, multiple tiles).
    N2 = 300
    x2 = jax.random.normal(jax.random.PRNGKey(1), (N2, 3), dtype=jnp.float32)
    out2 = jax.block_until_ready(
        positional_encoding(x2, num_freq_bands=6, include_input=True, tile_n=128)
    )
    ref2 = _reference(x2, num_freq_bands=6, include_input=True)
    assert out2.shape == (N2, 42), out2.shape
    assert jnp.allclose(out2, ref2, atol=1e-5, rtol=1e-5), "mismatch vs reference (N=300)"

    print("KERNEL_OK")
</pallas_src>

<mosaic_0001>
module attributes {stable_mosaic.version = 11 : i64} {
  func.func @_pe_kernel(%arg0: i32, %arg1: memref<3x128xf32, #tpu.memory_space<vmem>>, %arg2: memref<42x128xf32, #tpu.memory_space<vmem>>) attributes {dimension_semantics = [#tpu.dimension_semantics<parallel>], iteration_bounds = array<i64: 1>, scalar_prefetch = 0 : i64, scratch_operands = 0 : i64, tpu.core_type = #tpu.core_type<tc>, window_params = [{transform_indices = @transform_0, window_bounds = array<i64: 3, 128>}, {transform_indices = @transform_1, window_bounds = array<i64: 42, 128>}]} {
    %c0 = arith.constant 0 : index
    %c0_0 = arith.constant 0 : index
    %0 = vector.load %arg1[%c0, %c0_0] : memref<3x128xf32, #tpu.memory_space<vmem>>, vector<3x128xf32>
    %c0_1 = arith.constant 0 : index
    %c0_2 = arith.constant 0 : index
    %1 = vector.load %arg2[%c0_1, %c0_2] : memref<42x128xf32, #tpu.memory_space<vmem>>, vector<3x128xf32>
    tpu.vector_store %arg2[%c0_1, %c0_2], %0 {strides = array<i32>} : memref<42x128xf32, #tpu.memory_space<vmem>>, vector<3x128xf32>,
    %c3 = arith.constant 3 : index
    %c0_3 = arith.constant 0 : index
    %2 = vector.load %arg2[%c3, %c0_3] : memref<42x128xf32, #tpu.memory_space<vmem>>, vector<3x128xf32>
    tpu.vector_store %arg2[%c3, %c0_3], %0 {strides = array<i32>} : memref<42x128xf32, #tpu.memory_space<vmem>>, vector<3x128xf32>,
    %cst = arith.constant 1.000000e+00 : f32
    %3 = vector.broadcast %cst : f32 to vector<3x128xf32>
    %4 = arith.mulf %3, %0 : vector<3x128xf32>
    %5 = math.sin %4 : vector<3x128xf32>
    %c6 = arith.constant 6 : index
    %c0_4 = arith.constant 0 : index
    %6 = vector.load %arg2[%c6, %c0_4] : memref<42x128xf32, #tpu.memory_space<vmem>>, vector<3x128xf32>
    tpu.vector_store %arg2[%c6, %c0_4], %5 {strides = array<i32>} : memref<42x128xf32, #tpu.memory_space<vmem>>, vector<3x128xf32>,
    %7 = math.cos %4 : vector<3x128xf32>
    %c9 = arith.constant 9 : index
    %c0_5 = arith.constant 0 : index
    %8 = vector.load %arg2[%c9, %c0_5] : memref<42x128xf32, #tpu.memory_space<vmem>>, vector<3x128xf32>
    tpu.vector_store %arg2[%c9, %c0_5], %7 {strides = array<i32>} : memref<42x128xf32, #tpu.memory_space<vmem>>, vector<3x128xf32>,
    %cst_6 = arith.constant 2.000000e+00 : f32
    %9 = vector.broadcast %cst_6 : f32 to vector<3x128xf32>
    %10 = arith.mulf %9, %0 : vector<3x128xf32>
    %11 = math.sin %10 : vector<3x128xf32>
    %c12 = arith.constant 12 : index
    %c0_7 = arith.constant 0 : index
    %12 = vector.load %arg2[%c12, %c0_7] : memref<42x128xf32, #tpu.memory_space<vmem>>, vector<3x128xf32>
    tpu.vector_store %arg2[%c12, %c0_7], %11 {strides = array<i32>} : memref<42x128xf32, #tpu.memory_space<vmem>>, vector<3x128xf32>,
    %13 = math.cos %10 : vector<3x128xf32>
    %c15 = arith.constant 15 : index
    %c0_8 = arith.constant 0 : index
    %14 = vector.load %arg2[%c15, %c0_8] : memref<42x128xf32, #tpu.memory_space<vmem>>, vector<3x128xf32>
    tpu.vector_store %arg2[%c15, %c0_8], %13 {strides = array<i32>} : memref<42x128xf32, #tpu.memory_space<vmem>>, vector<3x128xf32>,
    %cst_9 = arith.constant 3.000000e+00 : f32
    %15 = vector.broadcast %cst_9 : f32 to vector<3x128xf32>
    %16 = arith.mulf %15, %0 : vector<3x128xf32>
    %17 = math.sin %16 : vector<3x128xf32>
    %c18 = arith.constant 18 : index
    %c0_10 = arith.constant 0 : index
    %18 = vector.load %arg2[%c18, %c0_10] : memref<42x128xf32, #tpu.memory_space<vmem>>, vector<3x128xf32>
    tpu.vector_store %arg2[%c18, %c0_10], %17 {strides = array<i32>} : memref<42x128xf32, #tpu.memory_space<vmem>>, vector<3x128xf32>,
    %19 = math.cos %16 : vector<3x128xf32>
    %c21 = arith.constant 21 : index
    %c0_11 = arith.constant 0 : index
    %20 = vector.load %arg2[%c21, %c0_11] : memref<42x128xf32, #tpu.memory_space<vmem>>, vector<3x128xf32>
    tpu.vector_store %arg2[%c21, %c0_11], %19 {strides = array<i32>} : memref<42x128xf32, #tpu.memory_space<vmem>>, vector<3x128xf32>,
    %cst_12 = arith.constant 4.000000e+00 : f32
    %21 = vector.broadcast %cst_12 : f32 to vector<3x128xf32>
    %22 = arith.mulf %21, %0 : vector<3x128xf32>
    %23 = math.sin %22 : vector<3x128xf32>
    %c24 = arith.constant 24 : index
    %c0_13 = arith.constant 0 : index
    %24 = vector.load %arg2[%c24, %c0_13] : memref<42x128xf32, #tpu.memory_space<vmem>>, vector<3x128xf32>
    tpu.vector_store %arg2[%c24, %c0_13], %23 {strides = array<i32>} : memref<42x128xf32, #tpu.memory_space<vmem>>, vector<3x128xf32>,
    %25 = math.cos %22 : vector<3x128xf32>
    %c27 = arith.constant 27 : index
    %c0_14 = arith.constant 0 : index
    %26 = vector.load %arg2[%c27, %c0_14] : memref<42x128xf32, #tpu.memory_space<vmem>>, vector<3x128xf32>
    tpu.vector_store %arg2[%c27, %c0_14], %25 {strides = array<i32>} : memref<42x128xf32, #tpu.memory_space<vmem>>, vector<3x128xf32>,
    %cst_15 = arith.constant 5.000000e+00 : f32
    %27 = vector.broadcast %cst_15 : f32 to vector<3x128xf32>
    %28 = arith.mulf %27, %0 : vector<3x128xf32>
    %29 = math.sin %28 : vector<3x128xf32>
    %c30 = arith.constant 30 : index
    %c0_16 = arith.constant 0 : index
    %30 = vector.load %arg2[%c30, %c0_16] : memref<42x128xf32, #tpu.memory_space<vmem>>, vector<3x128xf32>
    tpu.vector_store %arg2[%c30, %c0_16], %29 {strides = array<i32>} : memref<42x128xf32, #tpu.memory_space<vmem>>, vector<3x128xf32>,
    %31 = math.cos %28 : vector<3x128xf32>
    %c33 = arith.constant 33 : index
    %c0_17 = arith.constant 0 : index
    %32 = vector.load %arg2[%c33, %c0_17] : memref<42x128xf32, #tpu.memory_space<vmem>>, vector<3x128xf32>
    tpu.vector_store %arg2[%c33, %c0_17], %31 {strides = array<i32>} : memref<42x128xf32, #tpu.memory_space<vmem>>, vector<3x128xf32>,
    %cst_18 = arith.constant 6.000000e+00 : f32
    %33 = vector.broadcast %cst_18 : f32 to vector<3x128xf32>
    %34 = arith.mulf %33, %0 : vector<3x128xf32>
    %35 = math.sin %34 : vector<3x128xf32>
    %c36 = arith.constant 36 : index
    %c0_19 = arith.constant 0 : index
    %36 = vector.load %arg2[%c36, %c0_19] : memref<42x128xf32, #tpu.memory_space<vmem>>, vector<3x128xf32>
    tpu.vector_store %arg2[%c36, %c0_19], %35 {strides = array<i32>} : memref<42x128xf32, #tpu.memory_space<vmem>>, vector<3x128xf32>,
    %37 = math.cos %34 : vector<3x128xf32>
    %c39 = arith.constant 39 : index
    %c0_20 = arith.constant 0 : index
    %38 = vector.load %arg2[%c39, %c0_20] : memref<42x128xf32, #tpu.memory_space<vmem>>, vector<3x128xf32>
    tpu.vector_store %arg2[%c39, %c0_20], %37 {strides = array<i32>} : memref<42x128xf32, #tpu.memory_space<vmem>>, vector<3x128xf32>,
    return
  }
  func.func @transform_0(%arg0: i32) -> (i32, i32) {
    %c0_i32 = arith.constant 0 : i32
    %c0_i32_0 = arith.constant 0 : i32
    return %c0_i32, %arg0 : i32, i32
  }
  func.func @transform_1(%arg0: i32) -> (i32, i32) {
    %c0_i32 = arith.constant 0 : i32
    %c0_i32_0 = arith.constant 0 : i32
    return %c0_i32, %arg0 : i32, i32
  }
}

</mosaic_0001>

<llo_original>
// kernel: tpu_custom_call.1
$region0: #{tpu_custom_call.1}
  #allocation0 [shape = 'u32[]', space=smem, size = 0x4, offset = 0x4, fixed_abs, tag = 'smem constant byte address 0x4 - core index']
  #allocation1 [shape = 'u32[72,128]{1,0:T(1,128)}', space=vmem, size = 0x9000, scoped, tag = 'internal scratch']
  %s0 = inlined_call_operand.hbm [shape: f32[3,128], index: 0, kind: input, shape index: {}]
  %s1 = inlined_call_operand.hbm [shape: f32[42,128], index: 1, kind: output, shape index: {}]
  %s2 = sld [smem:[#allocation0]]
  $region18: #{tpu_custom_call.1} parent=0
    _
  %s4 = ssub.s32 1, %s2
  %s5 = scalar_select 0, %s4, %s2
  $region1: #{tpu_custom_call.1} parent=0
    #allocation2 [shape = 'u8[2048]{0}', space=vmem, size = 0x800, scoped, tag = 'input window, operand 0, single buffered']
    #allocation3 [shape = 's32[1]{0}', space=sflag, size = 0x4, scoped, tag = 'scoped memory for tpu_custom_call.1']
    #allocation4 [shape = 's32[1]{0}', space=sflag, size = 0x4, scoped, tag = 'scoped memory for tpu_custom_call.1']
    #allocation5 [shape = 'u8[24576]{0}', space=vmem, size = 0x6000, scoped, tag = 'output window, operand 0, single buffered']
    %6 = vsyncpa [#allocation3], 0
    %7 = vsyncpa [#allocation4], 0
    // Predicated region
    $region2: #{tpu_custom_call.1} parent=1 // pred_check
      _
    $region3: #{tpu_custom_call.1} parent=1 // pred_check_branch
      %9 = sbr.rel (0) target = $region5
    $region4: #{tpu_custom_call.1} parent=1 // pred_region
      %11 = vsyncadd [#allocation3], 0
      %s13 = sshll.u32 %s0, 4
      %s14 = int_to_ptr.hbm [resolvable:$true] %s13
      %s15 = sshll.u32 [#allocation2], 4
      %s16 = int_to_ptr.vmem [resolvable:$true] %s15
      %18 = dma.hbm_to_vmem [thread:$0]  %s14, 64, %s16, [#allocation3]
    $region5: #{tpu_custom_call.1} parent=1 // pred_fallthru
      _
    // Predicated region
    $region6: #{tpu_custom_call.1} parent=1 // pred_check
      _
    $region7: #{tpu_custom_call.1} parent=1 // pred_check_branch
      %20 = sbr.rel (0) target = $region9
    $region8: #{tpu_custom_call.1} parent=1 // pred_region
      %22 = dma.done [#allocation3], 64
    $region9: #{tpu_custom_call.1} parent=1 // pred_fallthru
      _
    %v23 = vld [vmem:[#allocation2] sm:$0x7]
    %24 = vst [vmem:[#allocation5] sm:$0x7] %v23
    %25 = vst [vmem:[#allocation5 + $0x3] sm:$0x7] %v23
    %v26 = vand.u32 2147483647, %v23
    %vm27 = vcmp.le.f32.partialorder %v26, 0.7853982
    %vm28 = vcmp.lt.s32.totalorder %v23, 0
    %v29 = vand.u32 %v23, 2139095040
    %v30 = vshrl.u32 %v29, 23
    %v31 = vsub.s32 %v30, 127
    %v32 = vand.u32 2147483647, %v23
    %v33 = vand.u32 %v32, 8388607
    %v34 = vor.u32 %v33, 8388608
    %v35 = vsub.s32 0, %v34
    %v36 = vadd.s32 %v31, 1
    %vm37 = vcmp.gt.s32.totalorder %v36, 0
    %v38 = vsel %vm37, %v36, 0
    %v39 = vshrl.u32 %v38, 5
    %v40 = vand.u32 %v38, 31
    %v41 = vsub.s32 32, %v40
    %v42 = vshrl.u32 683565275, %v41
    %v43 = vshll.u32 683565275, %v40
    %v44 = vshrl.u32 2475754826, %v41
    %v45 = vor.u32 %v43, %v44
    %v46 = vshll.u32 2475754826, %v40
    %v47 = vshrl.u32 2131351028, %v41
    %v48 = vor.u32 %v46, %v47
    %v49 = vshll.u32 2131351028, %v40
    %v50 = vshrl.u32 2102212464, %v41
    %v51 = vor.u32 %v49, %v50
    %v52 = vshll.u32 2102212464, %v40
    %v53 = vshrl.u32 920167782, %v41
    %v54 = vor.u32 %v52, %v53
    %v55 = vshll.u32 920167782, %v40
    %v56 = vshrl.u32 1326507024, %v41
    %v57 = vor.u32 %v55, %v56
    %vm58 = vcmp.lt.s32.totalorder %v39, 1
    %vm59 = vcmp.lt.s32.totalorder %v39, 2
    %vm60 = vcmp.lt.s32.totalorder %v39, 3
    %vm61 = vcmp.lt.s32.totalorder %v39, 4
    %v62 = vsel %vm58, %v42, %v45
    %v63 = vsel %vm61, %v51, 2102212464
    %v64 = vsel %vm60, %v48, %v63
    %v65 = vsel %vm59, %v62, %v64
    %v66 = vsel %vm58, %v45, %v48
    %v67 = vsel %vm61, %v54, 920167782
    %v68 = vsel %vm60, %v51, %v67
    %v69 = vsel %vm59, %v66, %v68
    %v70 = vsel %vm58, %v48, %v51
    %v71 = vsel %vm61, %v57, 1326507024
    %v72 = vsel %vm60, %v54, %v71
    %v73 = vsel %vm59, %v70, %v72
    %v74 = vshll.u32 %v34, 8
    %v75 = vand.u32 %v74, 65535
    %v76 = vshrl.u32 %v74, 16
    %v77 = vand.u32 %v73, 65535
    %v78 = vshrl.u32 %v73, 16
    %v79 = vmul.u32 %v75, %v77
    %v80 = vmul.u32 %v75, %v78
    %v81 = vmul.u32 %v76, %v77
    %v82 = vmul.u32 %v76, %v78
    %v83 = vshll.u32 %v80, 16
    %v84 = vshrl.u32 %v80, 16
    %v85 = vshll.u32 %v81, 16
    %v86 = vshrl.u32 %v81, 16
    %vm87 = vc.u32 %v79, %v83
    %v88 = vsel %vm87, 1, 0
    %v89 = vadd.s32 %v79, %v83
    %v90 = vadd.s32 %v82, %v88
    %vm91 = vc.u32 %v89, %v85
    %v92 = vsel %vm91, 1, 0
    %v93 = vadd.s32 %v89, %v85
    %v94 = vadd.s32 %v90, %v92
    %v95 = vadd.s32 %v94, %v84
    %v96 = vadd.s32 %v95, %v86
    %v97 = vand.u32 %v74, 65535
    %v98 = vshrl.u32 %v74, 16
    %v99 = vand.u32 %v69, 65535
    %v100 = vshrl.u32 %v69, 16
    %v101 = vmul.u32 %v97, %v99
    %v102 = vmul.u32 %v97, %v100
    %v103 = vmul.u32 %v98, %v99
    %v104 = vmul.u32 %v98, %v100
    %v105 = vshll.u32 %v102, 16
    %v106 = vshrl.u32 %v102, 16
    %v107 = vshll.u32 %v103, 16
    %v108 = vshrl.u32 %v103, 16
    %vm109 = vc.u32 %v101, %v105
    %v110 = vsel %vm109, 1, 0
    %v111 = vadd.s32 %v101, %v105
    %v112 = vadd.s32 %v104, %v110
    %vm113 = vc.u32 %v111, %v107
    %v114 = vsel %vm113, 1, 0
    %v115 = vadd.s32 %v111, %v107
    %v116 = vadd.s32 %v112, %v114
    %v117 = vadd.s32 %v116, %v106
    %v118 = vadd.s32 %v117, %v108
    %v119 = vmul.u32 %v74, %v65
    %v120 = vadd.s32 %v96, %v115
    %vm121 = vc.u32 %v96, %v115
    %v122 = vadd.s32 %v118, 1
    %v123 = vsel %vm121, %v122, %v118
    %v124 = vadd.s32 %v119, %v123
    %v125 = vadd.s32 %v124, 536870912
    %v126 = vshrl.u32 %v125, 30
    %v127 = vshll.u32 %v126, 30
    %v128 = vsub.s32 %v124, %v127
    %vm129 = vcmp.lt.s32.totalorder %v128, 0
    %v130 = vsub.s32 0, %v128
    %v131 = vsel %vm129, %v130, %v128
    %v132 = vclz %v131
    %v133 = vsub.s32 %v132, 2
    %vm134 = vcmp.gt.s32.totalorder 0, %v133
    %v135 = vsel %vm134, 0, %v133
    %v136 = vsub.s32 32, %v135
    %v137 = vshll.u32 %v128, %v135
    %v138 = vshrl.u32 %v120, %v136
    %v139 = vor.u32 %v137, %v138
    %v140 = vsub.s32 4294967266, %v135
    %v141 = vadd.s32 %v140, 127
    %v142 = vshll.u32 %v141, 23
    %v143 = vor.u32 4788187, %v142
    %v144 = vand.u32 2147483647, %v143
    %v146 = vcvt.s32.f32 %v139
    %v147 = vmul.f32 %v146, %v144
    %v148 = vxor.u32 %v147, 2147483648
    %v149 = vsel %vm28, %v148, %v147
    %v150 = vsub.s32 4, %v126
    %v151 = vsel %vm28, %v150, %v126
    %v152 = vsel %vm27, %v23, %v149
    %v153 = vsel %vm27, 0, %v151
    %v154 = vmul.f32 %v152, %v152
    %v155 = vmul.f32 %v154, -0.001358992
    %v156 = vadd.f32 %v155, 0.041655596
    %v157 = vmul.f32 %v154, %v156
    %v158 = vadd.f32 %v157, -0.4999988
    %v159 = vmul.f32 %v154, %v158
    %v160 = vadd.f32 1.0, %v159
    %v161 = vmul.f32 %v152, %v152
    %v162 = vmul.f32 %v161, -0.00019511016
    %v163 = vadd.f32 %v162, 0.008332121
    %v164 = vmul.f32 %v161, %v163
    %v165 = vadd.f32 %v164, -0.16666654
    %v166 = vmul.f32 %v161, %v165
    %v167 = vadd.f32 %v166, 1.0
    %v168 = vmul.f32 %v167, %v152
    %vm169 = vweird.f32 %v23
    %v170 = vadd.s32 %v153, 3
    %v171 = vand.u32 %v170, 3
    %vm172 = vcmp.lt.s32.totalorder %v171, 2
    %vm173 = vcmp.eq.s32.totalorder %v171, 0
    %v174 = vxor.u32 %v168, 2147483648
    %v175 = vsel %vm173, %v160, %v174
    %vm176 = vcmp.eq.s32.totalorder %v171, 2
    %v177 = vxor.u32 %v160, 2147483648
    %v178 = vsel %vm176, %v177, %v168
    %v179 = vsel %vm172, %v175, %v178
    %v180 = vsel %vm169, nan, %v179
    %181 = vst [vmem:[#allocation5 + $0x6] sm:$0x7] %v180
    %v182 = vand.u32 2147483647, %v23
    %vm183 = vcmp.le.f32.partialorder %v182, 0.7853982
    %vm184 = vcmp.lt.s32.totalorder %v23, 0
    %v185 = vand.u32 %v23, 2139095040
    %v186 = vshrl.u32 %v185, 23
    %v187 = vsub.s32 %v186, 127
    %v188 = vand.u32 2147483647, %v23
    %v189 = vand.u32 %v188, 8388607
    %v190 = vor.u32 %v189, 8388608
    %v191 = vsub.s32 0, %v190
    %v192 = vadd.s32 %v187, 1
    %vm193 = vcmp.gt.s32.totalorder %v192, 0
    %v194 = vsel %vm193, %v192, 0
    %v195 = vshrl.u32 %v194, 5
    %v196 = vand.u32 %v194, 31
    %v197 = vsub.s32 32, %v196
    %v198 = vshrl.u32 683565275, %v197
    %v199 = vshll.u32 683565275, %v196
    %v200 = vshrl.u32 2475754826, %v197
    %v201 = vor.u32 %v199, %v200
    %v202 = vshll.u32 2475754826, %v196
    %v203 = vshrl.u32 2131351028, %v197
    %v204 = vor.u32 %v202, %v203
    %v205 = vshll.u32 2131351028, %v196
    %v206 = vshrl.u32 2102212464, %v197
    %v207 = vor.u32 %v205, %v206
    %v208 = vshll.u32 2102212464, %v196
    %v209 = vshrl.u32 920167782, %v197
    %v210 = vor.u32 %v208, %v209
    %v211 = vshll.u32 920167782, %v196
    %v212 = vshrl.u32 1326507024, %v197
    %v213 = vor.u32 %v211, %v212
    %vm214 = vcmp.lt.s32.totalorder %v195, 1
    %vm215 = vcmp.lt.s32.totalorder %v195, 2
    %vm216 = vcmp.lt.s32.totalorder %v195, 3
    %vm217 = vcmp.lt.s32.totalorder %v195, 4
    %v218 = vsel %vm214, %v198, %v201
    %v219 = vsel %vm217, %v207, 2102212464
    %v220 = vsel %vm216, %v204, %v219
    %v221 = vsel %vm215, %v218, %v220
    %v222 = vsel %vm214, %v201, %v204
    %v223 = vsel %vm217, %v210, 920167782
    %v224 = vsel %vm216, %v207, %v223
    %v225 = vsel %vm215, %v222, %v224
    %v226 = vsel %vm214, %v204, %v207
    %v227 = vsel %vm217, %v213, 1326507024
    %v228 = vsel %vm216, %v210, %v227
    %v229 = vsel %vm215, %v226, %v228
    %v230 = vshll.u32 %v190, 8
    %v231 = vand.u32 %v230, 65535
    %v232 = vshrl.u32 %v230, 16
    %v233 = vand.u32 %v229, 65535
    %v234 = vshrl.u32 %v229, 16
    %v235 = vmul.u32 %v231, %v233
    %v236 = vmul.u32 %v231, %v234
    %v237 = vmul.u32 %v232, %v233
    %v238 = vmul.u32 %v232, %v234
    %v239 = vshll.u32 %v236, 16
    %v240 = vshrl.u32 %v236, 16
    %v241 = vshll.u32 %v237, 16
    %v242 = vshrl.u32 %v237, 16
    %vm243 = vc.u32 %v235, %v239
    %v244 = vsel %vm243, 1, 0
    %v245 = vadd.s32 %v235, %v239
    %v246 = vadd.s32 %v238, %v244
    %vm247 = vc.u32 %v245, %v241
    %v248 = vsel %vm247, 1, 0
    %v249 = vadd.s32 %v245, %v241
    %v250 = vadd.s32 %v246, %v248
    %v251 = vadd.s32 %v250, %v240
    %v252 = vadd.s32 %v251, %v242
    %v253 = vand.u32 %v230, 65535
    %v254 = vshrl.u32 %v230, 16
    %v255 = vand.u32 %v225, 65535
    %v256 = vshrl.u32 %v225, 16
    %v257 = vmul.u32 %v253, %v255
    %v258 = vmul.u32 %v253, %v256
    %v259 = vmul.u32 %v254, %v255
    %v260 = vmul.u32 %v254, %v256
    %v261 = vshll.u32 %v258, 16
    %v262 = vshrl.u32 %v258, 16
    %v263 = vshll.u32 %v259, 16
    %v264 = vshrl.u32 %v259, 16
    %vm265 = vc.u32 %v257, %v261
    %v266 = vsel %vm265, 1, 0
    %v267 = vadd.s32 %v257, %v261
    %v268 = vadd.s32 %v260, %v266
    %vm269 = vc.u32 %v267, %v263
    %v270 = vsel %vm269, 1, 0
    %v271 = vadd.s32 %v267, %v263
    %v272 = vadd.s32 %v268, %v270
    %v273 = vadd.s32 %v272, %v262
    %v274 = vadd.s32 %v273, %v264
    %v275 = vmul.u32 %v230, %v221
    %v276 = vadd.s32 %v252, %v271
    %vm277 = vc.u32 %v252, %v271
    %v278 = vadd.s32 %v274, 1
    %v279 = vsel %vm277, %v278, %v274
    %v280 = vadd.s32 %v275, %v279
    %v281 = vadd.s32 %v280, 536870912
    %v282 = vshrl.u32 %v281, 30
    %v283 = vshll.u32 %v282, 30
    %v284 = vsub.s32 %v280, %v283
    %vm285 = vcmp.lt.s32.totalorder %v284, 0
    %v286 = vsub.s32 0, %v284
    %v287 = vsel %vm285, %v286, %v284
    %v288 = vclz %v287
    %v289 = vsub.s32 %v288, 2
    %vm290 = vcmp.gt.s32.totalorder 0, %v289
    %v291 = vsel %vm290, 0, %v289
    %v292 = vsub.s32 32, %v291
    %v293 = vshll.u32 %v284, %v291
    %v294 = vshrl.u32 %v276, %v292
    %v295 = vor.u32 %v293, %v294
    %v296 = vsub.s32 4294967266, %v291
    %v297 = vadd.s32 %v296, 127
    %v298 = vshll.u32 %v297, 23
    %v299 = vor.u32 4788187, %v298
    %v300 = vand.u32 2147483647, %v299
    %v302 = vcvt.s32.f32 %v295
    %v303 = vmul.f32 %v302, %v300
    %v304 = vxor.u32 %v303, 2147483648
    %v305 = vsel %vm184, %v304, %v303
    %v306 = vsub.s32 4, %v282
    %v307 = vsel %vm184, %v306, %v282
    %v308 = vsel %vm183, %v23, %v305
    %v309 = vsel %vm183, 0, %v307
    %v310 = vmul.f32 %v308, %v308
    %v311 = vmul.f32 %v310, -0.001358992
    %v312 = vadd.f32 %v311, 0.041655596
    %v313 = vmul.f32 %v310, %v312
    %v314 = vadd.f32 %v313, -0.4999988
    %v315 = vmul.f32 %v310, %v314
    %v316 = vadd.f32 1.0, %v315
    %v317 = vmul.f32 %v308, %v308
    %v318 = vmul.f32 %v317, -0.00019511016
    %v319 = vadd.f32 %v318, 0.008332121
    %v320 = vmul.f32 %v317, %v319
    %v321 = vadd.f32 %v320, -0.16666654
    %v322 = vmul.f32 %v317, %v321
    %v323 = vadd.f32 %v322, 1.0
    %v324 = vmul.f32 %v323, %v308
    %vm325 = vweird.f32 %v23
    %v326 = vand.u32 %v309, 3
    %vm327 = vcmp.lt.s32.totalorder %v326, 2
    %vm328 = vcmp.eq.s32.totalorder %v326, 0
    %v329 = vxor.u32 %v324, 2147483648
    %v330 = vsel %vm328, %v316, %v329
    %vm331 = vcmp.eq.s32.totalorder %v326, 2
    %v332 = vxor.u32 %v316, 2147483648
    %v333 = vsel %vm331, %v332, %v324
    %v334 = vsel %vm327, %v330, %v333
    %v335 = vsel %vm325, nan, %v334
    %336 = vst [vmem:[#allocation5 + $0x9] sm:$0x7] %v335
    %v337 = vmul.f32 %v23, 2.0
    %v338 = vand.u32 2147483647, %v337
    %vm339 = vcmp.le.f32.partialorder %v338, 0.7853982
    %vm340 = vcmp.lt.s32.totalorder %v337, 0
    %v341 = vand.u32 %v337, 2139095040
    %v342 = vshrl.u32 %v341, 23
    %v343 = vsub.s32 %v342, 127
    %v344 = vand.u32 2147483647, %v337
    %v345 = vand.u32 %v344, 8388607
    %v346 = vor.u32 %v345, 8388608
    %v347 = vsub.s32 0, %v346
    %v348 = vadd.s32 %v343, 1
    %vm349 = vcmp.gt.s32.totalorder %v348, 0
    %v350 = vsel %vm349, %v348, 0
    %v351 = vshrl.u32 %v350, 5
    %v352 = vand.u32 %v350, 31
    %v353 = vsub.s32 32, %v352
    %v354 = vshrl.u32 683565275, %v353
    %v355 = vshll.u32 683565275, %v352
    %v356 = vshrl.u32 2475754826, %v353
    %v357 = vor.u32 %v355, %v356
    %v358 = vshll.u32 2475754826, %v352
    %v359 = vshrl.u32 2131351028, %v353
    %v360 = vor.u32 %v358, %v359
    %v361 = vshll.u32 2131351028, %v352
    %v362 = vshrl.u32 2102212464, %v353
    %v363 = vor.u32 %v361, %v362
    %v364 = vshll.u32 2102212464, %v352
    %v365 = vshrl.u32 920167782, %v353
    %v366 = vor.u32 %v364, %v365
    %v367 = vshll.u32 920167782, %v352
    %v368 = vshrl.u32 1326507024, %v353
    %v369 = vor.u32 %v367, %v368
    %vm370 = vcmp.lt.s32.totalorder %v351, 1
    %vm371 = vcmp.lt.s32.totalorder %v351, 2
    %vm372 = vcmp.lt.s32.totalorder %v351, 3
    %vm373 = vcmp.lt.s32.totalorder %v351, 4
    %v374 = vsel %vm370, %v354, %v357
    %v375 = vsel %vm373, %v363, 2102212464
    %v376 = vsel %vm372, %v360, %v375
    %v377 = vsel %vm371, %v374, %v376
    %v378 = vsel %vm370, %v357, %v360
    %v379 = vsel %vm373, %v366, 920167782
    %v380 = vsel %vm372, %v363, %v379
    %v381 = vsel %vm371, %v378, %v380
    %v382 = vsel %vm370, %v360, %v363
    %v383 = vsel %vm373, %v369, 1326507024
    %v384 = vsel %vm372, %v366, %v383
    %v385 = vsel %vm371, %v382, %v384
    %v386 = vshll.u32 %v346, 8
    %v387 = vand.u32 %v386, 65535
    %v388 = vshrl.u32 %v386, 16
    %v389 = vand.u32 %v385, 65535
    %v390 = vshrl.u32 %v385, 16
    %v391 = vmul.u32 %v387, %v389
    %v392 = vmul.u32 %v387, %v390
    %v393 = vmul.u32 %v388, %v389
    %v394 = vmul.u32 %v388, %v390
    %v395 = vshll.u32 %v392, 16
    %v396 = vshrl.u32 %v392, 16
    %v397 = vshll.u32 %v393, 16
    %v398 = vshrl.u32 %v393, 16
    %vm399 = vc.u32 %v391, %v395
    %v400 = vsel %vm399, 1, 0
    %v401 = vadd.s32 %v391, %v395
    %v402 = vadd.s32 %v394, %v400
    %vm403 = vc.u32 %v401, %v397
    %v404 = vsel %vm403, 1, 0
    %v405 = vadd.s32 %v401, %v397
    %v406 = vadd.s32 %v402, %v404
    %v407 = vadd.s32 %v406, %v396
    %v408 = vadd.s32 %v407, %v398
    %v409 = vand.u32 %v386, 65535
    %v410 = vshrl.u32 %v386, 16
    %v411 = vand.u32 %v381, 65535
    %v412 = vshrl.u32 %v381, 16
    %v413 = vmul.u32 %v409, %v411
    %v414 = vmul.u32 %v409, %v412
    %v415 = vmul.u32 %v410, %v411
    %v416 = vmul.u32 %v410, %v412
    %v417 = vshll.u32 %v414, 16
    %v418 = vshrl.u32 %v414, 16
    %v419 = vshll.u32 %v415, 16
    %v420 = vshrl.u32 %v415, 16
    %vm421 = vc.u32 %v413, %v417
    %v422 = vsel %vm421, 1, 0
    %v423 = vadd.s32 %v413, %v417
    %v424 = vadd.s32 %v416, %v422
    %vm425 = vc.u32 %v423, %v419
    %v426 = vsel %vm425, 1, 0
    %v427 = vadd.s32 %v423, %v419
    %v428 = vadd.s32 %v424, %v426
    %v429 = vadd.s32 %v428, %v418
    %v430 = vadd.s32 %v429, %v420
    %v431 = vmul.u32 %v386, %v377
    %v432 = vadd.s32 %v408, %v427
    %vm433 = vc.u32 %v408, %v427
    %v434 = vadd.s32 %v430, 1
    %v435 = vsel %vm433, %v434, %v430
    %v436 = vadd.s32 %v431, %v435
    %v437 = vadd.s32 %v436, 536870912
    %v438 = vshrl.u32 %v437, 30
    %v439 = vshll.u32 %v438, 30
    %v440 = vsub.s32 %v436, %v439
    %vm441 = vcmp.lt.s32.totalorder %v440, 0
    %v442 = vsub.s32 0, %v440
    %v443 = vsel %vm441, %v442, %v440
    %v444 = vclz %v443
    %v445 = vsub.s32 %v444, 2
    %vm446 = vcmp.gt.s32.totalorder 0, %v445
    %v447 = vsel %vm446, 0, %v445
    %v448 = vsub.s32 32, %v447
    %v449 = vshll.u32 %v440, %v447
    %v450 = vshrl.u32 %v432, %v448
    %v451 = vor.u32 %v449, %v450
    %v452 = vsub.s32 4294967266, %v447
    %v453 = vadd.s32 %v452, 127
    %v454 = vshll.u32 %v453, 23
    %v455 = vor.u32 4788187, %v454
    %v456 = vand.u32 2147483647, %v455
    %v458 = vcvt.s32.f32 %v451
    %v459 = vmul.f32 %v458, %v456
    %v460 = vxor.u32 %v459, 2147483648
    %v461 = vsel %vm340, %v460, %v459
    %v462 = vsub.s32 4, %v438
    %v463 = vsel %vm340, %v462, %v438
    %v464 = vsel %vm339, %v337, %v461
    %v465 = vsel %vm339, 0, %v463
    %v466 = vmul.f32 %v464, %v464
    %v467 = vmul.f32 %v466, -0.001358992
    %v468 = vadd.f32 %v467, 0.041655596
    %v469 = vmul.f32 %v466, %v468
    %v470 = vadd.f32 %v469, -0.4999988
    %v471 = vmul.f32 %v466, %v470
    %v472 = vadd.f32 1.0, %v471
    %v473 = vmul.f32 %v464, %v464
    %v474 = vmul.f32 %v473, -0.00019511016
    %v475 = vadd.f32 %v474, 0.008332121
    %v476 = vmul.f32 %v473, %v475
    %v477 = vadd.f32 %v476, -0.16666654
    %v478 = vmul.f32 %v473, %v477
    %v479 = vadd.f32 %v478, 1.0
    %v480 = vmul.f32 %v479, %v464
    %vm481 = vweird.f32 %v337
    %v482 = vadd.s32 %v465, 3
    %v483 = vand.u32 %v482, 3
    %vm484 = vcmp.lt.s32.totalorder %v483, 2
    %vm485 = vcmp.eq.s32.totalorder %v483, 0
    %v486 = vxor.u32 %v480, 2147483648
    %v487 = vsel %vm485, %v472, %v486
    %vm488 = vcmp.eq.s32.totalorder %v483, 2
    %v489 = vxor.u32 %v472, 2147483648
    %v490 = vsel %vm488, %v489, %v480
    %v491 = vsel %vm484, %v487, %v490
    %v492 = vsel %vm481, nan, %v491
    %493 = vst [vmem:[#allocation5 + $0xc] sm:$0x7] %v492
    %v494 = vand.u32 2147483647, %v337
    %vm495 = vcmp.le.f32.partialorder %v494, 0.7853982
    %vm496 = vcmp.lt.s32.totalorder %v337, 0
    %v497 = vand.u32 %v337, 2139095040
    %v498 = vshrl.u32 %v497, 23
    %v499 = vsub.s32 %v498, 127
    %v500 = vand.u32 2147483647, %v337
    %v501 = vand.u32 %v500, 8388607
    %v502 = vor.u32 %v501, 8388608
    %v503 = vsub.s32 0, %v502
    %v504 = vadd.s32 %v499, 1
    %vm505 = vcmp.gt.s32.totalorder %v504, 0
    %v506 = vsel %vm505, %v504, 0
    %v507 = vshrl.u32 %v506, 5
    %v508 = vand.u32 %v506, 31
    %v509 = vsub.s32 32, %v508
    %v510 = vshrl.u32 683565275, %v509
    %v511 = vshll.u32 683565275, %v508
    %v512 = vshrl.u32 2475754826, %v509
    %v513 = vor.u32 %v511, %v512
    %v514 = vshll.u32 2475754826, %v508
    %v515 = vshrl.u32 2131351028, %v509
    %v516 = vor.u32 %v514, %v515
    %v517 = vshll.u32 2131351028, %v508
    %v518 = vshrl.u32 2102212464, %v509
    %v519 = vor.u32 %v517, %v518
    %v520 = vshll.u32 2102212464, %v508
    %v521 = vshrl.u32 920167782, %v509
    %v522 = vor.u32 %v520, %v521
    %v523 = vshll.u32 920167782, %v508
    %v524 = vshrl.u32 1326507024, %v509
    %v525 = vor.u32 %v523, %v524
    %vm526 = vcmp.lt.s32.totalorder %v507, 1
    %vm527 = vcmp.lt.s32.totalorder %v507, 2
    %vm528 = vcmp.lt.s32.totalorder %v507, 3
    %vm529 = vcmp.lt.s32.totalorder %v507, 4
    %v530 = vsel %vm526, %v510, %v513
    %v531 = vsel %vm529, %v519, 2102212464
    %v532 = vsel %vm528, %v516, %v531
    %v533 = vsel %vm527, %v530, %v532
    %v534 = vsel %vm526, %v513, %v516
    %v535 = vsel %vm529, %v522, 920167782
    %v536 = vsel %vm528, %v519, %v535
    %v537 = vsel %vm527, %v534, %v536
    %v538 = vsel %vm526, %v516, %v519
    %v539 = vsel %vm529, %v525, 1326507024
    %v540 = vsel %vm528, %v522, %v539
    %v541 = vsel %vm527, %v538, %v540
    %v542 = vshll.u32 %v502, 8
    %v543 = vand.u32 %v542, 65535
    %v544 = vshrl.u32 %v542, 16
    %v545 = vand.u32 %v541, 65535
    %v546 = vshrl.u32 %v541, 16
    %v547 = vmul.u32 %v543, %v545
    %v548 = vmul.u32 %v543, %v546
    %v549 = vmul.u32 %v544, %v545
    %v550 = vmul.u32 %v544, %v546
    %v551 = vshll.u32 %v548, 16
    %v552 = vshrl.u32 %v548, 16
    %v553 = vshll.u32 %v549, 16
    %v554 = vshrl.u32 %v549, 16
    %vm555 = vc.u32 %v547, %v551
    %v556 = vsel %vm555, 1, 0
    %v557 = vadd.s32 %v547, %v551
    %v558 = vadd.s32 %v550, %v556
    %vm559 = vc.u32 %v557, %v553
    %v560 = vsel %vm559, 1, 0
    %v561 = vadd.s32 %v557, %v553
    %v562 = vadd.s32 %v558, %v560
    %v563 = vadd.s32 %v562, %v552
    %v564 = vadd.s32 %v563, %v554
    %v565 = vand.u32 %v542, 65535
    %v566 = vshrl.u32 %v542, 16
    %v567 = vand.u32 %v537, 65535
    %v568 = vshrl.u32 %v537, 16
    %v569 = vmul.u32 %v565, %v567
    %v570 = vmul.u32 %v565, %v568
    %v571 = vmul.u32 %v566, %v567
    %v572 = vmul.u32 %v566, %v568
    %v573 = vshll.u32 %v570, 16
    %v574 = vshrl.u32 %v570, 16
    %v575 = vshll.u32 %v571, 16
    %v576 = vshrl.u32 %v571, 16
    %vm577 = vc.u32 %v569, %v573
    %v578 = vsel %vm577, 1, 0
    %v579 = vadd.s32 %v569, %v573
    %v580 = vadd.s32 %v572, %v578
    %vm581 = vc.u32 %v579, %v575
    %v582 = vsel %vm581, 1, 0
    %v583 = vadd.s32 %v579, %v575
    %v584 = vadd.s32 %v580, %v582
    %v585 = vadd.s32 %v584, %v574
    %v586 = vadd.s32 %v585, %v576
    %v587 = vmul.u32 %v542, %v533
    %v588 = vadd.s32 %v564, %v583
    %vm589 = vc.u32 %v564, %v583
    %v590 = vadd.s32 %v586, 1
    %v591 = vsel %vm589, %v590, %v586
    %v592 = vadd.s32 %v587, %v591
    %v593 = vadd.s32 %v592, 536870912
    %v594 = vshrl.u32 %v593, 30
    %v595 = vshll.u32 %v594, 30
    %v596 = vsub.s32 %v592, %v595
    %vm597 = vcmp.lt.s32.totalorder %v596, 0
    %v598 = vsub.s32 0, %v596
    %v599 = vsel %vm597, %v598, %v596
    %v600 = vclz %v599
    %v601 = vsub.s32 %v600, 2
    %vm602 = vcmp.gt.s32.totalorder 0, %v601
    %v603 = vsel %vm602, 0, %v601
    %v604 = vsub.s32 32, %v603
    %v605 = vshll.u32 %v596, %v603
    %v606 = vshrl.u32 %v588, %v604
    %v607 = vor.u32 %v605, %v606
    %v608 = vsub.s32 4294967266, %v603
    %v609 = vadd.s32 %v608, 127
    %v610 = vshll.u32 %v609, 23
    %v611 = vor.u32 4788187, %v610
    %v612 = vand.u32 2147483647, %v611
    %v614 = vcvt.s32.f32 %v607
    %v615 = vmul.f32 %v614, %v612
    %v616 = vxor.u32 %v615, 2147483648
    %v617 = vsel %vm496, %v616, %v615
    %v618 = vsub.s32 4, %v594
    %v619 = vsel %vm496, %v618, %v594
    %v620 = vsel %vm495, %v337, %v617
    %v621 = vsel %vm495, 0, %v619
    %v622 = vmul.f32 %v620, %v620
    %v623 = vmul.f32 %v622, -0.001358992
    %v624 = vadd.f32 %v623, 0.041655596
    %v625 = vmul.f32 %v622, %v624
    %v626 = vadd.f32 %v625, -0.4999988
    %v627 = vmul.f32 %v622, %v626
    %v628 = vadd.f32 1.0, %v627
    %v629 = vmul.f32 %v620, %v620
    %v630 = vmul.f32 %v629, -0.00019511016
    %v631 = vadd.f32 %v630, 0.008332121
    %v632 = vmul.f32 %v629, %v631
    %v633 = vadd.f32 %v632, -0.16666654
    %v634 = vmul.f32 %v629, %v633
    %v635 = vadd.f32 %v634, 1.0
    %v636 = vmul.f32 %v635, %v620
    %vm637 = vweird.f32 %v337
    %v638 = vand.u32 %v621, 3
    %vm639 = vcmp.lt.s32.totalorder %v638, 2
    %vm640 = vcmp.eq.s32.totalorder %v638, 0
    %v641 = vxor.u32 %v636, 2147483648
    %v642 = vsel %vm640, %v628, %v641
    %vm643 = vcmp.eq.s32.totalorder %v638, 2
    %v644 = vxor.u32 %v628, 2147483648
    %v645 = vsel %vm643, %v644, %v636
    %v646 = vsel %vm639, %v642, %v645
    %v647 = vsel %vm637, nan, %v646
    %648 = vst [vmem:[#allocation5 + $0xf] sm:$0x7] %v647
    %v649 = vmul.f32 %v23, 3.0
    %v650 = vand.u32 2147483647, %v649
    %vm651 = vcmp.le.f32.partialorder %v650, 0.7853982
    %vm652 = vcmp.lt.s32.totalorder %v649, 0
    %v653 = vand.u32 %v649, 2139095040
    %v654 = vshrl.u32 %v653, 23
    %v655 = vsub.s32 %v654, 127
    %v656 = vand.u32 2147483647, %v649
    %v657 = vand.u32 %v656, 8388607
    %v658 = vor.u32 %v657, 8388608
    %v659 = vsub.s32 0, %v658
    %v660 = vadd.s32 %v655, 1
    %vm661 = vcmp.gt.s32.totalorder %v660, 0
    %v662 = vsel %vm661, %v660, 0
    %v663 = vshrl.u32 %v662, 5
    %v664 = vand.u32 %v662, 31
    %v665 = vsub.s32 32, %v664
    %v666 = vshrl.u32 683565275, %v665
    %v667 = vshll.u32 683565275, %v664
    %v668 = vshrl.u32 2475754826, %v665
    %v669 = vor.u32 %v667, %v668
    %v670 = vshll.u32 2475754826, %v664
    %v671 = vshrl.u32 2131351028, %v665
    %v672 = vor.u32 %v670, %v671
    %v673 = vshll.u32 2131351028, %v664
    %v674 = vshrl.u32 2102212464, %v665
    %v675 = vor.u32 %v673, %v674
    %v676 = vshll.u32 2102212464, %v664
    %v677 = vshrl.u32 920167782, %v665
    %v678 = vor.u32 %v676, %v677
    %v679 = vshll.u32 920167782, %v664
    %v680 = vshrl.u32 1326507024, %v665
    %v681 = vor.u32 %v679, %v680
    %vm682 = vcmp.lt.s32.totalorder %v663, 1
    %vm683 = vcmp.lt.s32.totalorder %v663, 2
    %vm684 = vcmp.lt.s32.totalorder %v663, 3
    %vm685 = vcmp.lt.s32.totalorder %v663, 4
    %v686 = vsel %vm682, %v666, %v669
    %v687 = vsel %vm685, %v675, 2102212464
    %v688 = vsel %vm684, %v672, %v687
    %v689 = vsel %vm683, %v686, %v688
    %v690 = vsel %vm682, %v669, %v672
    %v691 = vsel %vm685, %v678, 920167782
    %v692 = vsel %vm684, %v675, %v691
    %v693 = vsel %vm683, %v690, %v692
    %v694 = vsel %vm682, %v672, %v675
    %v695 = vsel %vm685, %v681, 1326507024
    %v696 = vsel %vm684, %v678, %v695
    %v697 = vsel %vm683, %v694, %v696
    %v698 = vshll.u32 %v658, 8
    %v699 = vand.u32 %v698, 65535
    %v700 = vshrl.u32 %v698, 16
    %v701 = vand.u32 %v697, 65535
    %v702 = vshrl.u32 %v697, 16
    %v703 = vmul.u32 %v699, %v701
    %v704 = vmul.u32 %v699, %v702
    %v705 = vmul.u32 %v700, %v701
    %v706 = vmul.u32 %v700, %v702
    %v707 = vshll.u32 %v704, 16
    %v708 = vshrl.u32 %v704, 16
    %v709 = vshll.u32 %v705, 16
    %v710 = vshrl.u32 %v705, 16
    %vm711 = vc.u32 %v703, %v707
    %v712 = vsel %vm711, 1, 0
    %v713 = vadd.s32 %v703, %v707
    %v714 = vadd.s32 %v706, %v712
    %vm715 = vc.u32 %v713, %v709
    %v716 = vsel %vm715, 1, 0
    %v717 = vadd.s32 %v713, %v709
    %v718 = vadd.s32 %v714, %v716
    %v719 = vadd.s32 %v718, %v708
    %v720 = vadd.s32 %v719, %v710
    %v721 = vand.u32 %v698, 65535
    %v722 = vshrl.u32 %v698, 16
    %v723 = vand.u32 %v693, 65535
    %v724 = vshrl.u32 %v693, 16
    %v725 = vmul.u32 %v721, %v723
    %v726 = vmul.u32 %v721, %v724
    %v727 = vmul.u32 %v722, %v723
    %v728 = vmul.u32 %v722, %v724
    %v729 = vshll.u32 %v726, 16
    %v730 = vshrl.u32 %v726, 16
    %v731 = vshll.u32 %v727, 16
    %v732 = vshrl.u32 %v727, 16
    %vm733 = vc.u32 %v725, %v729
    %v734 = vsel %vm733, 1, 0
    %v735 = vadd.s32 %v725, %v729
    %v736 = vadd.s32 %v728, %v734
    %vm737 = vc.u32 %v735, %v731
    %v738 = vsel %vm737, 1, 0
    %v739 = vadd.s32 %v735, %v731
    %v740 = vadd.s32 %v736, %v738
    %v741 = vadd.s32 %v740, %v730
    %v742 = vadd.s32 %v741, %v732
    %v743 = vmul.u32 %v698, %v689
    %v744 = vadd.s32 %v720, %v739
    %vm745 = vc.u32 %v720, %v739
    %v746 = vadd.s32 %v742, 1
    %v747 = vsel %vm745, %v746, %v742
    %v748 = vadd.s32 %v743, %v747
    %v749 = vadd.s32 %v748, 536870912
    %v750 = vshrl.u32 %v749, 30
    %v751 = vshll.u32 %v750, 30
    %v752 = vsub.s32 %v748, %v751
    %vm753 = vcmp.lt.s32.totalorder %v752, 0
    %v754 = vsub.s32 0, %v752
    %v755 = vsel %vm753, %v754, %v752
    %v756 = vclz %v755
    %v757 = vsub.s32 %v756, 2
    %vm758 = vcmp.gt.s32.totalorder 0, %v757
    %v759 = vsel %vm758, 0, %v757
    %v760 = vsub.s32 32, %v759
    %v761 = vshll.u32 %v752, %v759
    %v762 = vshrl.u32 %v744, %v760
    %v763 = vor.u32 %v761, %v762
    %v764 = vsub.s32 4294967266, %v759
    %v765 = vadd.s32 %v764, 127
    %v766 = vshll.u32 %v765, 23
    %v767 = vor.u32 4788187, %v766
    %v768 = vand.u32 2147483647, %v767
    %v770 = vcvt.s32.f32 %v763
    %v771 = vmul.f32 %v770, %v768
    %v772 = vxor.u32 %v771, 2147483648
    %v773 = vsel %vm652, %v772, %v771
    %v774 = vsub.s32 4, %v750
    %v775 = vsel %vm652, %v774, %v750
    %v776 = vsel %vm651, %v649, %v773
    %v777 = vsel %vm651, 0, %v775
    %v778 = vmul.f32 %v776, %v776
    %v779 = vmul.f32 %v778, -0.001358992
    %v780 = vadd.f32 %v779, 0.041655596
    %v781 = vmul.f32 %v778, %v780
    %v782 = vadd.f32 %v781, -0.4999988
    %v783 = vmul.f32 %v778, %v782
    %v784 = vadd.f32 1.0, %v783
    %v785 = vmul.f32 %v776, %v776
    %v786 = vmul.f32 %v785, -0.00019511016
    %v787 = vadd.f32 %v786, 0.008332121
    %v788 = vmul.f32 %v785, %v787
    %v789 = vadd.f32 %v788, -0.16666654
    %v790 = vmul.f32 %v785, %v789
    %v791 = vadd.f32 %v790, 1.0
    %v792 = vmul.f32 %v791, %v776
    %vm793 = vweird.f32 %v649
    %v794 = vadd.s32 %v777, 3
    %v795 = vand.u32 %v794, 3
    %vm796 = vcmp.lt.s32.totalorder %v795, 2
    %vm797 = vcmp.eq.s32.totalorder %v795, 0
    %v798 = vxor.u32 %v792, 2147483648
    %v799 = vsel %vm797, %v784, %v798
    %vm800 = vcmp.eq.s32.totalorder %v795, 2
    %v801 = vxor.u32 %v784, 2147483648
    %v802 = vsel %vm800, %v801, %v792
    %v803 = vsel %vm796, %v799, %v802
    %v804 = vsel %vm793, nan, %v803
    %805 = vst [vmem:[#allocation5 + $0x12] sm:$0x7] %v804
    %v806 = vand.u32 2147483647, %v649
    %vm807 = vcmp.le.f32.partialorder %v806, 0.7853982
    %vm808 = vcmp.lt.s32.totalorder %v649, 0
    %v809 = vand.u32 %v649, 2139095040
    %v810 = vshrl.u32 %v809, 23
    %v811 = vsub.s32 %v810, 127
    %v812 = vand.u32 2147483647, %v649
    %v813 = vand.u32 %v812, 8388607
    %v814 = vor.u32 %v813, 8388608
    %v815 = vsub.s32 0, %v814
    %v816 = vadd.s32 %v811, 1
    %vm817 = vcmp.gt.s32.totalorder %v816, 0
    %v818 = vsel %vm817, %v816, 0
    %v819 = vshrl.u32 %v818, 5
    %v820 = vand.u32 %v818, 31
    %v821 = vsub.s32 32, %v820
    %v822 = vshrl.u32 683565275, %v821
    %v823 = vshll.u32 683565275, %v820
    %v824 = vshrl.u32 2475754826, %v821
    %v825 = vor.u32 %v823, %v824
    %v826 = vshll.u32 2475754826, %v820
    %v827 = vshrl.u32 2131351028, %v821
    %v828 = vor.u32 %v826, %v827
    %v829 = vshll.u32 2131351028, %v820
    %v830 = vshrl.u32 2102212464, %v821
    %v831 = vor.u32 %v829, %v830
    %v832 = vshll.u32 2102212464, %v820
    %v833 = vshrl.u32 920167782, %v821
    %v834 = vor.u32 %v832, %v833
    %v835 = vshll.u32 920167782, %v820
    %v836 = vshrl.u32 1326507024, %v821
    %v837 = vor.u32 %v835, %v836
    %vm838 = vcmp.lt.s32.totalorder %v819, 1
    %vm839 = vcmp.lt.s32.totalorder %v819, 2
    %vm840 = vcmp.lt.s32.totalorder %v819, 3
    %vm841 = vcmp.lt.s32.totalorder %v819, 4
    %v842 = vsel %vm838, %v822, %v825
    %v843 = vsel %vm841, %v831, 2102212464
    %v844 = vsel %vm840, %v828, %v843
    %v845 = vsel %vm839, %v842, %v844
    %v846 = vsel %vm838, %v825, %v828
    %v847 = vsel %vm841, %v834, 920167782
    %v848 = vsel %vm840, %v831, %v847
    %v849 = vsel %vm839, %v846, %v848
    %v850 = vsel %vm838, %v828, %v831
    %v851 = vsel %vm841, %v837, 1326507024
    %v852 = vsel %vm840, %v834, %v851
    %v853 = vsel %vm839, %v850, %v852
    %v854 = vshll.u32 %v814, 8
    %v855 = vand.u32 %v854, 65535
    %v856 = vshrl.u32 %v854, 16
    %v857 = vand.u32 %v853, 65535
    %v858 = vshrl.u32 %v853, 16
    %v859 = vmul.u32 %v855, %v857
    %v860 = vmul.u32 %v855, %v858
    %v861 = vmul.u32 %v856, %v857
    %v862 = vmul.u32 %v856, %v858
    %v863 = vshll.u32 %v860, 16
    %v864 = vshrl.u32 %v860, 16
    %v865 = vshll.u32 %v861, 16
    %v866 = vshrl.u32 %v861, 16
    %vm867 = vc.u32 %v859, %v863
    %v868 = vsel %vm867, 1, 0
    %v869 = vadd.s32 %v859, %v863
    %v870 = vadd.s32 %v862, %v868
    %vm871 = vc.u32 %v869, %v865
    %v872 = vsel %vm871, 1, 0
    %v873 = vadd.s32 %v869, %v865
    %v874 = vadd.s32 %v870, %v872
    %v875 = vadd.s32 %v874, %v864
    %v876 = vadd.s32 %v875, %v866
    %v877 = vand.u32 %v854, 65535
    %v878 = vshrl.u32 %v854, 16
    %v879 = vand.u32 %v849, 65535
    %v880 = vshrl.u32 %v849, 16
    %v881 = vmul.u32 %v877, %v879
    %v882 = vmul.u32 %v877, %v880
    %v883 = vmul.u32 %v878, %v879
    %v884 = vmul.u32 %v878, %v880
    %v885 = vshll.u32 %v882, 16
    %v886 = vshrl.u32 %v882, 16
    %v887 = vshll.u32 %v883, 16
    %v888 = vshrl.u32 %v883, 16
    %vm889 = vc.u32 %v881, %v885
    %v890 = vsel %vm889, 1, 0
    %v891 = vadd.s32 %v881, %v885
    %v892 = vadd.s32 %v884, %v890
    %vm893 = vc.u32 %v891, %v887
    %v894 = vsel %vm893, 1, 0
    %v895 = vadd.s32 %v891, %v887
    %v896 = vadd.s32 %v892, %v894
    %v897 = vadd.s32 %v896, %v886
    %v898 = vadd.s32 %v897, %v888
    %v899 = vmul.u32 %v854, %v845
    %v900 = vadd.s32 %v876, %v895
    %vm901 = vc.u32 %v876, %v895
    %v902 = vadd.s32 %v898, 1
    %v903 = vsel %vm901, %v902, %v898
    %v904 = vadd.s32 %v899, %v903
    %v905 = vadd.s32 %v904, 536870912
    %v906 = vshrl.u32 %v905, 30
    %v907 = vshll.u32 %v906, 30
    %v908 = vsub.s32 %v904, %v907
    %vm909 = vcmp.lt.s32.totalorder %v908, 0
    %v910 = vsub.s32 0, %v908
    %v911 = vsel %vm909, %v910, %v908
    %v912 = vclz %v911
    %v913 = vsub.s32 %v912, 2
    %vm914 = vcmp.gt.s32.totalorder 0, %v913
    %v915 = vsel %vm914, 0, %v913
    %v916 = vsub.s32 32, %v915
    %v917 = vshll.u32 %v908, %v915
    %v918 = vshrl.u32 %v900, %v916
    %v919 = vor.u32 %v917, %v918
    %v920 = vsub.s32 4294967266, %v915
    %v921 = vadd.s32 %v920, 127
    %v922 = vshll.u32 %v921, 23
    %v923 = vor.u32 4788187, %v922
    %v924 = vand.u32 2147483647, %v923
    %v926 = vcvt.s32.f32 %v919
    %v927 = vmul.f32 %v926, %v924
    %v928 = vxor.u32 %v927, 2147483648
    %v929 = vsel %vm808, %v928, %v927
    %v930 = vsub.s32 4, %v906
    %v931 = vsel %vm808, %v930, %v906
    %v932 = vsel %vm807, %v649, %v929
    %v933 = vsel %vm807, 0, %v931
    %v934 = vmul.f32 %v932, %v932
    %v935 = vmul.f32 %v934, -0.001358992
    %v936 = vadd.f32 %v935, 0.041655596
    %v937 = vmul.f32 %v934, %v936
    %v938 = vadd.f32 %v937, -0.4999988
    %v939 = vmul.f32 %v934, %v938
    %v940 = vadd.f32 1.0, %v939
    %v941 = vmul.f32 %v932, %v932
    %v942 = vmul.f32 %v941, -0.00019511016
    %v943 = vadd.f32 %v942, 0.008332121
    %v944 = vmul.f32 %v941, %v943
    %v945 = vadd.f32 %v944, -0.16666654
    %v946 = vmul.f32 %v941, %v945
    %v947 = vadd.f32 %v946, 1.0
    %v948 = vmul.f32 %v947, %v932
    %vm949 = vweird.f32 %v649
    %v950 = vand.u32 %v933, 3
    %vm951 = vcmp.lt.s32.totalorder %v950, 2
    %vm952 = vcmp.eq.s32.totalorder %v950, 0
    %v953 = vxor.u32 %v948, 2147483648
    %v954 = vsel %vm952, %v940, %v953
    %vm955 = vcmp.eq.s32.totalorder %v950, 2
    %v956 = vxor.u32 %v940, 2147483648
    %v957 = vsel %vm955, %v956, %v948
    %v958 = vsel %vm951, %v954, %v957
    %v959 = vsel %vm949, nan, %v958
    %960 = vst [vmem:[#allocation5 + $0x15] sm:$0x7] %v959
    %v961 = vmul.f32 %v23, 4.0
    %v962 = vand.u32 2147483647, %v961
    %vm963 = vcmp.le.f32.partialorder %v962, 0.7853982
    %vm964 = vcmp.lt.s32.totalorder %v961, 0
    %v965 = vand.u32 %v961, 2139095040
    %v966 = vshrl.u32 %v965, 23
    %v967 = vsub.s32 %v966, 127
    %v968 = vand.u32 2147483647, %v961
    %v969 = vand.u32 %v968, 8388607
    %v970 = vor.u32 %v969, 8388608
    %v971 = vsub.s32 0, %v970
    %v972 = vadd.s32 %v967, 1
    %vm973 = vcmp.gt.s32.totalorder %v972, 0
    %v974 = vsel %vm973, %v972, 0
    %v975 = vshrl.u32 %v974, 5
    %v976 = vand.u32 %v974, 31
    %v977 = vsub.s32 32, %v976
    %v978 = vshrl.u32 683565275, %v977
    %v979 = vshll.u32 683565275, %v976
    %v980 = vshrl.u32 2475754826, %v977
    %v981 = vor.u32 %v979, %v980
    %v982 = vshll.u32 2475754826, %v976
    %v983 = vshrl.u32 2131351028, %v977
    %v984 = vor.u32 %v982, %v983
    %v985 = vshll.u32 2131351028, %v976
    %v986 = vshrl.u32 2102212464, %v977
    %v987 = vor.u32 %v985, %v986
    %v988 = vshll.u32 2102212464, %v976
    %v989 = vshrl.u32 920167782, %v977
    %v990 = vor.u32 %v988, %v989
    %v991 = vshll.u32 920167782, %v976
    %v992 = vshrl.u32 1326507024, %v977
    %v993 = vor.u32 %v991, %v992
    %vm994 = vcmp.lt.s32.totalorder %v975, 1
    %vm995 = vcmp.lt.s32.totalorder %v975, 2
    %vm996 = vcmp.lt.s32.totalorder %v975, 3
    %vm997 = vcmp.lt.s32.totalorder %v975, 4
    %v998 = vsel %vm994, %v978, %v981
    %v999 = vsel %vm997, %v987, 2102212464
    %v1000 = vsel %vm996, %v984, %v999
    %v1001 = vsel %vm995, %v998, %v1000
    %v1002 = vsel %vm994, %v981, %v984
    %v1003 = vsel %vm997, %v990, 920167782
    %v1004 = vsel %vm996, %v987, %v1003
    %v1005 = vsel %vm995, %v1002, %v1004
    %v1006 = vsel %vm994, %v984, %v987
    %v1007 = vsel %vm997, %v993, 1326507024
    %v1008 = vsel %vm996, %v990, %v1007
    %v1009 = vsel %vm995, %v1006, %v1008
    %v1010 = vshll.u32 %v970, 8
    %v1011 = vand.u32 %v1010, 65535
    %v1012 = vshrl.u32 %v1010, 16
    %v1013 = vand.u32 %v1009, 65535
    %v1014 = vshrl.u32 %v1009, 16
    %v1015 = vmul.u32 %v1011, %v1013
    %v1016 = vmul.u32 %v1011, %v1014
    %v1017 = vmul.u32 %v1012, %v1013
    %v1018 = vmul.u32 %v1012, %v1014
    %v1019 = vshll.u32 %v1016, 16
    %v1020 = vshrl.u32 %v1016, 16
    %v1021 = vshll.u32 %v1017, 16
    %v1022 = vshrl.u32 %v1017, 16
    %vm1023 = vc.u32 %v1015, %v1019
    %v1024 = vsel %vm1023, 1, 0
    %v1025 = vadd.s32 %v1015, %v1019
    %v1026 = vadd.s32 %v1018, %v1024
    %vm1027 = vc.u32 %v1025, %v1021
    %v1028 = vsel %vm1027, 1, 0
    %v1029 = vadd.s32 %v1025, %v1021
    %v1030 = vadd.s32 %v1026, %v1028
    %v1031 = vadd.s32 %v1030, %v1020
    %v1032 = vadd.s32 %v1031, %v1022
    %v1033 = vand.u32 %v1010, 65535
    %v1034 = vshrl.u32 %v1010, 16
    %v1035 = vand.u32 %v1005, 65535
    %v1036 = vshrl.u32 %v1005, 16
    %v1037 = vmul.u32 %v1033, %v1035
    %v1038 = vmul.u32 %v1033, %v1036
    %v1039 = vmul.u32 %v1034, %v1035
    %v1040 = vmul.u32 %v1034, %v1036
    %v1041 = vshll.u32 %v1038, 16
    %v1042 = vshrl.u32 %v1038, 16
    %v1043 = vshll.u32 %v1039, 16
    %v1044 = vshrl.u32 %v1039, 16
    %vm1045 = vc.u32 %v1037, %v1041
    %v1046 = vsel %vm1045, 1, 0
    %v1047 = vadd.s32 %v1037, %v1041
    %v1048 = vadd.s32 %v1040, %v1046
    %vm1049 = vc.u32 %v1047, %v1043
    %v1050 = vsel %vm1049, 1, 0
    %v1051 = vadd.s32 %v1047, %v1043
    %v1052 = vadd.s32 %v1048, %v1050
    %v1053 = vadd.s32 %v1052, %v1042
    %v1054 = vadd.s32 %v1053, %v1044
    %v1055 = vmul.u32 %v1010, %v1001
    %v1056 = vadd.s32 %v1032, %v1051
    %vm1057 = vc.u32 %v1032, %v1051
    %v1058 = vadd.s32 %v1054, 1
    %v1059 = vsel %vm1057, %v1058, %v1054
    %v1060 = vadd.s32 %v1055, %v1059
    %v1061 = vadd.s32 %v1060, 536870912
    %v1062 = vshrl.u32 %v1061, 30
    %v1063 = vshll.u32 %v1062, 30
    %v1064 = vsub.s32 %v1060, %v1063
    %vm1065 = vcmp.lt.s32.totalorder %v1064, 0
    %v1066 = vsub.s32 0, %v1064
    %v1067 = vsel %vm1065, %v1066, %v1064
    %v1068 = vclz %v1067
    %v1069 = vsub.s32 %v1068, 2
    %vm1070 = vcmp.gt.s32.totalorder 0, %v1069
    %v1071 = vsel %vm1070, 0, %v1069
    %v1072 = vsub.s32 32, %v1071
    %v1073 = vshll.u32 %v1064, %v1071
    %v1074 = vshrl.u32 %v1056, %v1072
    %v1075 = vor.u32 %v1073, %v1074
    %v1076 = vsub.s32 4294967266, %v1071
    %v1077 = vadd.s32 %v1076, 127
    %v1078 = vshll.u32 %v1077, 23
    %v1079 = vor.u32 4788187, %v1078
    %v1080 = vand.u32 2147483647, %v1079
    %v1082 = vcvt.s32.f32 %v1075
    %v1083 = vmul.f32 %v1082, %v1080
    %v1084 = vxor.u32 %v1083, 2147483648
    %v1085 = vsel %vm964, %v1084, %v1083
    %v1086 = vsub.s32 4, %v1062
    %v1087 = vsel %vm964, %v1086, %v1062
    %v1088 = vsel %vm963, %v961, %v1085
    %v1089 = vsel %vm963, 0, %v1087
    %v1090 = vmul.f32 %v1088, %v1088
    %v1091 = vmul.f32 %v1090, -0.001358992
    %v1092 = vadd.f32 %v1091, 0.041655596
    %v1093 = vmul.f32 %v1090, %v1092
    %v1094 = vadd.f32 %v1093, -0.4999988
    %v1095 = vmul.f32 %v1090, %v1094
    %v1096 = vadd.f32 1.0, %v1095
    %v1097 = vmul.f32 %v1088, %v1088
    %v1098 = vmul.f32 %v1097, -0.00019511016
    %v1099 = vadd.f32 %v1098, 0.008332121
    %v1100 = vmul.f32 %v1097, %v1099
    %v1101 = vadd.f32 %v1100, -0.16666654
    %v1102 = vmul.f32 %v1097, %v1101
    %v1103 = vadd.f32 %v1102, 1.0
    %v1104 = vmul.f32 %v1103, %v1088
    %vm1105 = vweird.f32 %v961
    %v1106 = vadd.s32 %v1089, 3
    %v1107 = vand.u32 %v1106, 3
    %vm1108 = vcmp.lt.s32.totalorder %v1107, 2
    %vm1109 = vcmp.eq.s32.totalorder %v1107, 0
    %v1110 = vxor.u32 %v1104, 2147483648
    %v1111 = vsel %vm1109, %v1096, %v1110
    %vm1112 = vcmp.eq.s32.totalorder %v1107, 2
    %v1113 = vxor.u32 %v1096, 2147483648
    %v1114 = vsel %vm1112, %v1113, %v1104
    %v1115 = vsel %vm1108, %v1111, %v1114
    %v1116 = vsel %vm1105, nan, %v1115
    %1117 = vst [vmem:[#allocation5 + $0x18] sm:$0x7] %v1116
    %v1118 = vand.u32 2147483647, %v961
    %vm1119 = vcmp.le.f32.partialorder %v1118, 0.7853982
    %vm1120 = vcmp.lt.s32.totalorder %v961, 0
    %v1121 = vand.u32 %v961, 2139095040
    %v1122 = vshrl.u32 %v1121, 23
    %v1123 = vsub.s32 %v1122, 127
    %v1124 = vand.u32 2147483647, %v961
    %v1125 = vand.u32 %v1124, 8388607
    %v1126 = vor.u32 %v1125, 8388608
    %v1127 = vsub.s32 0, %v1126
    %v1128 = vadd.s32 %v1123, 1
    %vm1129 = vcmp.gt.s32.totalorder %v1128, 0
    %v1130 = vsel %vm1129, %v1128, 0
    %v1131 = vshrl.u32 %v1130, 5
    %v1132 = vand.u32 %v1130, 31
    %v1133 = vsub.s32 32, %v1132
    %v1134 = vshrl.u32 683565275, %v1133
    %v1135 = vshll.u32 683565275, %v1132
    %v1136 = vshrl.u32 2475754826, %v1133
    %v1137 = vor.u32 %v1135, %v1136
    %v1138 = vshll.u32 2475754826, %v1132
    %v1139 = vshrl.u32 2131351028, %v1133
    %v1140 = vor.u32 %v1138, %v1139
    %v1141 = vshll.u32 2131351028, %v1132
    %v1142 = vshrl.u32 2102212464, %v1133
    %v1143 = vor.u32 %v1141, %v1142
    %v1144 = vshll.u32 2102212464, %v1132
    %v1145 = vshrl.u32 920167782, %v1133
    %v1146 = vor.u32 %v1144, %v1145
    %v1147 = vshll.u32 920167782, %v1132
    %v1148 = vshrl.u32 1326507024, %v1133
    %v1149 = vor.u32 %v1147, %v1148
    %vm1150 = vcmp.lt.s32.totalorder %v1131, 1
    %vm1151 = vcmp.lt.s32.totalorder %v1131, 2
    %vm1152 = vcmp.lt.s32.totalorder %v1131, 3
    %vm1153 = vcmp.lt.s32.totalorder %v1131, 4
    %v1154 = vsel %vm1150, %v1134, %v1137
    %v1155 = vsel %vm1153, %v1143, 2102212464
    %v1156 = vsel %vm1152, %v1140, %v1155
    %v1157 = vsel %vm1151, %v1154, %v1156
    %v1158 = vsel %vm1150, %v1137, %v1140
    %v1159 = vsel %vm1153, %v1146, 920167782
    %v1160 = vsel %vm1152, %v1143, %v1159
    %v1161 = vsel %vm1151, %v1158, %v1160
    %v1162 = vsel %vm1150, %v1140, %v1143
    %v1163 = vsel %vm1153, %v1149, 1326507024
    %v1164 = vsel %vm1152, %v1146, %v1163
    %v1165 = vsel %vm1151, %v1162, %v1164
    %v1166 = vshll.u32 %v1126, 8
    %v1167 = vand.u32 %v1166, 65535
    %v1168 = vshrl.u32 %v1166, 16
    %v1169 = vand.u32 %v1165, 65535
    %v1170 = vshrl.u32 %v1165, 16
    %v1171 = vmul.u32 %v1167, %v1169
    %v1172 = vmul.u32 %v1167, %v1170
    %v1173 = vmul.u32 %v1168, %v1169
    %v1174 = vmul.u32 %v1168, %v1170
    %v1175 = vshll.u32 %v1172, 16
    %v1176 = vshrl.u32 %v1172, 16
    %v1177 = vshll.u32 %v1173, 16
    %v1178 = vshrl.u32 %v1173, 16
    %vm1179 = vc.u32 %v1171, %v1175
    %v1180 = vsel %vm1179, 1, 0
    %v1181 = vadd.s32 %v1171, %v1175
    %v1182 = vadd.s32 %v1174, %v1180
    %vm1183 = vc.u32 %v1181, %v1177
    %v1184 = vsel %vm1183, 1, 0
    %v1185 = vadd.s32 %v1181, %v1177
    %v1186 = vadd.s32 %v1182, %v1184
    %v1187 = vadd.s32 %v1186, %v1176
    %v1188 = vadd.s32 %v1187, %v1178
    %v1189 = vand.u32 %v1166, 65535
    %v1190 = vshrl.u32 %v1166, 16
    %v1191 = vand.u32 %v1161, 65535
    %v1192 = vshrl.u32 %v1161, 16
    %v1193 = vmul.u32 %v1189, %v1191
    %v1194 = vmul.u32 %v1189, %v1192
    %v1195 = vmul.u32 %v1190, %v1191
    %v1196 = vmul.u32 %v1190, %v1192
    %v1197 = vshll.u32 %v1194, 16
    %v1198 = vshrl.u32 %v1194, 16
    %v1199 = vshll.u32 %v1195, 16
    %v1200 = vshrl.u32 %v1195, 16
    %vm1201 = vc.u32 %v1193, %v1197
    %v1202 = vsel %vm1201, 1, 0
    %v1203 = vadd.s32 %v1193, %v1197
    %v1204 = vadd.s32 %v1196, %v1202
    %vm1205 = vc.u32 %v1203, %v1199
    %v1206 = vsel %vm1205, 1, 0
    %v1207 = vadd.s32 %v1203, %v1199
    %v1208 = vadd.s32 %v1204, %v1206
    %v1209 = vadd.s32 %v1208, %v1198
    %v1210 = vadd.s32 %v1209, %v1200
    %v1211 = vmul.u32 %v1166, %v1157
    %v1212 = vadd.s32 %v1188, %v1207
    %vm1213 = vc.u32 %v1188, %v1207
    %v1214 = vadd.s32 %v1210, 1
    %v1215 = vsel %vm1213, %v1214, %v1210
    %v1216 = vadd.s32 %v1211, %v1215
    %v1217 = vadd.s32 %v1216, 536870912
    %v1218 = vshrl.u32 %v1217, 30
    %v1219 = vshll.u32 %v1218, 30
    %v1220 = vsub.s32 %v1216, %v1219
    %vm1221 = vcmp.lt.s32.totalorder %v1220, 0
    %v1222 = vsub.s32 0, %v1220
    %v1223 = vsel %vm1221, %v1222, %v1220
    %v1224 = vclz %v1223
    %v1225 = vsub.s32 %v1224, 2
    %vm1226 = vcmp.gt.s32.totalorder 0, %v1225
    %v1227 = vsel %vm1226, 0, %v1225
    %v1228 = vsub.s32 32, %v1227
    %v1229 = vshll.u32 %v1220, %v1227
    %v1230 = vshrl.u32 %v1212, %v1228
    %v1231 = vor.u32 %v1229, %v1230
    %v1232 = vsub.s32 4294967266, %v1227
    %v1233 = vadd.s32 %v1232, 127
    %v1234 = vshll.u32 %v1233, 23
    %v1235 = vor.u32 4788187, %v1234
    %v1236 = vand.u32 2147483647, %v1235
    %v1238 = vcvt.s32.f32 %v1231
    %v1239 = vmul.f32 %v1238, %v1236
    %v1240 = vxor.u32 %v1239, 2147483648
    %v1241 = vsel %vm1120, %v1240, %v1239
    %v1242 = vsub.s32 4, %v1218
    %v1243 = vsel %vm1120, %v1242, %v1218
    %v1244 = vsel %vm1119, %v961, %v1241
    %v1245 = vsel %vm1119, 0, %v1243
    %v1246 = vmul.f32 %v1244, %v1244
    %v1247 = vmul.f32 %v1246, -0.001358992
    %v1248 = vadd.f32 %v1247, 0.041655596
    %v1249 = vmul.f32 %v1246, %v1248
    %v1250 = vadd.f32 %v1249, -0.4999988
    %v1251 = vmul.f32 %v1246, %v1250
    %v1252 = vadd.f32 1.0, %v1251
    %v1253 = vmul.f32 %v1244, %v1244
    %v1254 = vmul.f32 %v1253, -0.00019511016
    %v1255 = vadd.f32 %v1254, 0.008332121
    %v1256 = vmul.f32 %v1253, %v1255
    %v1257 = vadd.f32 %v1256, -0.16666654
    %v1258 = vmul.f32 %v1253, %v1257
    %v1259 = vadd.f32 %v1258, 1.0
    %v1260 = vmul.f32 %v1259, %v1244
    %vm1261 = vweird.f32 %v961
    %v1262 = vand.u32 %v1245, 3
    %vm1263 = vcmp.lt.s32.totalorder %v1262, 2
    %vm1264 = vcmp.eq.s32.totalorder %v1262, 0
    %v1265 = vxor.u32 %v1260, 2147483648
    %v1266 = vsel %vm1264, %v1252, %v1265
    %vm1267 = vcmp.eq.s32.totalorder %v1262, 2
    %v1268 = vxor.u32 %v1252, 2147483648
    %v1269 = vsel %vm1267, %v1268, %v1260
    %v1270 = vsel %vm1263, %v1266, %v1269
    %v1271 = vsel %vm1261, nan, %v1270
    %1272 = vst [vmem:[#allocation5 + $0x1b] sm:$0x7] %v1271
    %v1273 = vmul.f32 %v23, 5.0
    %v1274 = vand.u32 2147483647, %v1273
    %vm1275 = vcmp.le.f32.partialorder %v1274, 0.7853982
    %vm1276 = vcmp.lt.s32.totalorder %v1273, 0
    %v1277 = vand.u32 %v1273, 2139095040
    %v1278 = vshrl.u32 %v1277, 23
    %v1279 = vsub.s32 %v1278, 127
    %v1280 = vand.u32 2147483647, %v1273
    %v1281 = vand.u32 %v1280, 8388607
    %v1282 = vor.u32 %v1281, 8388608
    %v1283 = vsub.s32 0, %v1282
    %v1284 = vadd.s32 %v1279, 1
    %vm1285 = vcmp.gt.s32.totalorder %v1284, 0
    %v1286 = vsel %vm1285, %v1284, 0
    %v1287 = vshrl.u32 %v1286, 5
    %v1288 = vand.u32 %v1286, 31
    %v1289 = vsub.s32 32, %v1288
    %v1290 = vshrl.u32 683565275, %v1289
    %v1291 = vshll.u32 683565275, %v1288
    %v1292 = vshrl.u32 2475754826, %v1289
    %v1293 = vor.u32 %v1291, %v1292
    %v1294 = vshll.u32 2475754826, %v1288
    %v1295 = vshrl.u32 2131351028, %v1289
    %v1296 = vor.u32 %v1294, %v1295
    %v1297 = vshll.u32 2131351028, %v1288
    %v1298 = vshrl.u32 2102212464, %v1289
    %v1299 = vor.u32 %v1297, %v1298
    %v1300 = vshll.u32 2102212464, %v1288
    %v1301 = vshrl.u32 920167782, %v1289
    %v1302 = vor.u32 %v1300, %v1301
    %v1303 = vshll.u32 920167782, %v1288
    %v1304 = vshrl.u32 1326507024, %v1289
    %v1305 = vor.u32 %v1303, %v1304
    %vm1306 = vcmp.lt.s32.totalorder %v1287, 1
    %vm1307 = vcmp.lt.s32.totalorder %v1287, 2
    %vm1308 = vcmp.lt.s32.totalorder %v1287, 3
    %vm1309 = vcmp.lt.s32.totalorder %v1287, 4
    %v1310 = vsel %vm1306, %v1290, %v1293
    %v1311 = vsel %vm1309, %v1299, 2102212464
    %v1312 = vsel %vm1308, %v1296, %v1311
    %v1313 = vsel %vm1307, %v1310, %v1312
    %v1314 = vsel %vm1306, %v1293, %v1296
    %v1315 = vsel %vm1309, %v1302, 920167782
    %v1316 = vsel %vm1308, %v1299, %v1315
    %v1317 = vsel %vm1307, %v1314, %v1316
    %v1318 = vsel %vm1306, %v1296, %v1299
    %v1319 = vsel %vm1309, %v1305, 1326507024
    %v1320 = vsel %vm1308, %v1302, %v1319
    %v1321 = vsel %vm1307, %v1318, %v1320
    %v1322 = vshll.u32 %v1282, 8
    %v1323 = vand.u32 %v1322, 65535
    %v1324 = vshrl.u32 %v1322, 16
    %v1325 = vand.u32 %v1321, 65535
    %v1326 = vshrl.u32 %v1321, 16
    %v1327 = vmul.u32 %v1323, %v1325
    %v1328 = vmul.u32 %v1323, %v1326
    %v1329 = vmul.u32 %v1324, %v1325
    %v1330 = vmul.u32 %v1324, %v1326
    %v1331 = vshll.u32 %v1328, 16
    %v1332 = vshrl.u32 %v1328, 16
    %v1333 = vshll.u32 %v1329, 16
    %v1334 = vshrl.u32 %v1329, 16
    %vm1335 = vc.u32 %v1327, %v1331
    %v1336 = vsel %vm1335, 1, 0
    %v1337 = vadd.s32 %v1327, %v1331
    %v1338 = vadd.s32 %v1330, %v1336
    %vm1339 = vc.u32 %v1337, %v1333
    %v1340 = vsel %vm1339, 1, 0
    %v1341 = vadd.s32 %v1337, %v1333
    %v1342 = vadd.s32 %v1338, %v1340
    %v1343 = vadd.s32 %v1342, %v1332
    %v1344 = vadd.s32 %v1343, %v1334
    %v1345 = vand.u32 %v1322, 65535
    %v1346 = vshrl.u32 %v1322, 16
    %v1347 = vand.u32 %v1317, 65535
    %v1348 = vshrl.u32 %v1317, 16
    %v1349 = vmul.u32 %v1345, %v1347
    %v1350 = vmul.u32 %v1345, %v1348
    %v1351 = vmul.u32 %v1346, %v1347
    %v1352 = vmul.u32 %v1346, %v1348
    %v1353 = vshll.u32 %v1350, 16
    %v1354 = vshrl.u32 %v1350, 16
    %v1355 = vshll.u32 %v1351, 16
    %v1356 = vshrl.u32 %v1351, 16
    %vm1357 = vc.u32 %v1349, %v1353
    %v1358 = vsel %vm1357, 1, 0
    %v1359 = vadd.s32 %v1349, %v1353
    %v1360 = vadd.s32 %v1352, %v1358
    %vm1361 = vc.u32 %v1359, %v1355
    %v1362 = vsel %vm1361, 1, 0
    %v1363 = vadd.s32 %v1359, %v1355
    %v1364 = vadd.s32 %v1360, %v1362
    %v1365 = vadd.s32 %v1364, %v1354
    %v1366 = vadd.s32 %v1365, %v1356
    %v1367 = vmul.u32 %v1322, %v1313
    %v1368 = vadd.s32 %v1344, %v1363
    %vm1369 = vc.u32 %v1344, %v1363
    %v1370 = vadd.s32 %v1366, 1
    %v1371 = vsel %vm1369, %v1370, %v1366
    %v1372 = vadd.s32 %v1367, %v1371
    %v1373 = vadd.s32 %v1372, 536870912
    %v1374 = vshrl.u32 %v1373, 30
    %v1375 = vshll.u32 %v1374, 30
    %v1376 = vsub.s32 %v1372, %v1375
    %vm1377 = vcmp.lt.s32.totalorder %v1376, 0
    %v1378 = vsub.s32 0, %v1376
    %v1379 = vsel %vm1377, %v1378, %v1376
    %v1380 = vclz %v1379
    %v1381 = vsub.s32 %v1380, 2
    %vm1382 = vcmp.gt.s32.totalorder 0, %v1381
    %v1383 = vsel %vm1382, 0, %v1381
    %v1384 = vsub.s32 32, %v1383
    %v1385 = vshll.u32 %v1376, %v1383
    %v1386 = vshrl.u32 %v1368, %v1384
    %v1387 = vor.u32 %v1385, %v1386
    %v1388 = vsub.s32 4294967266, %v1383
    %v1389 = vadd.s32 %v1388, 127
    %v1390 = vshll.u32 %v1389, 23
    %v1391 = vor.u32 4788187, %v1390
    %v1392 = vand.u32 2147483647, %v1391
    %v1394 = vcvt.s32.f32 %v1387
    %v1395 = vmul.f32 %v1394, %v1392
    %v1396 = vxor.u32 %v1395, 2147483648
    %v1397 = vsel %vm1276, %v1396, %v1395
    %v1398 = vsub.s32 4, %v1374
    %v1399 = vsel %vm1276, %v1398, %v1374
    %v1400 = vsel %vm1275, %v1273, %v1397
    %v1401 = vsel %vm1275, 0, %v1399
    %v1402 = vmul.f32 %v1400, %v1400
    %v1403 = vmul.f32 %v1402, -0.001358992
    %v1404 = vadd.f32 %v1403, 0.041655596
    %v1405 = vmul.f32 %v1402, %v1404
    %v1406 = vadd.f32 %v1405, -0.4999988
    %v1407 = vmul.f32 %v1402, %v1406
    %v1408 = vadd.f32 1.0, %v1407
    %v1409 = vmul.f32 %v1400, %v1400
    %v1410 = vmul.f32 %v1409, -0.00019511016
    %v1411 = vadd.f32 %v1410, 0.008332121
    %v1412 = vmul.f32 %v1409, %v1411
    %v1413 = vadd.f32 %v1412, -0.16666654
    %v1414 = vmul.f32 %v1409, %v1413
    %v1415 = vadd.f32 %v1414, 1.0
    %v1416 = vmul.f32 %v1415, %v1400
    %vm1417 = vweird.f32 %v1273
    %v1418 = vadd.s32 %v1401, 3
    %v1419 = vand.u32 %v1418, 3
    %vm1420 = vcmp.lt.s32.totalorder %v1419, 2
    %vm1421 = vcmp.eq.s32.totalorder %v1419, 0
    %v1422 = vxor.u32 %v1416, 2147483648
    %v1423 = vsel %vm1421, %v1408, %v1422
    %vm1424 = vcmp.eq.s32.totalorder %v1419, 2
    %v1425 = vxor.u32 %v1408, 2147483648
    %v1426 = vsel %vm1424, %v1425, %v1416
    %v1427 = vsel %vm1420, %v1423, %v1426
    %v1428 = vsel %vm1417, nan, %v1427
    %1429 = vst [vmem:[#allocation5 + $0x1e] sm:$0x7] %v1428
    %v1430 = vand.u32 2147483647, %v1273
    %vm1431 = vcmp.le.f32.partialorder %v1430, 0.7853982
    %vm1432 = vcmp.lt.s32.totalorder %v1273, 0
    %v1433 = vand.u32 %v1273, 2139095040
    %v1434 = vshrl.u32 %v1433, 23
    %v1435 = vsub.s32 %v1434, 127
    %v1436 = vand.u32 2147483647, %v1273
    %v1437 = vand.u32 %v1436, 8388607
    %v1438 = vor.u32 %v1437, 8388608
    %v1439 = vsub.s32 0, %v1438
    %v1440 = vadd.s32 %v1435, 1
    %vm1441 = vcmp.gt.s32.totalorder %v1440, 0
    %v1442 = vsel %vm1441, %v1440, 0
    %v1443 = vshrl.u32 %v1442, 5
    %v1444 = vand.u32 %v1442, 31
    %v1445 = vsub.s32 32, %v1444
    %v1446 = vshrl.u32 683565275, %v1445
    %v1447 = vshll.u32 683565275, %v1444
    %v1448 = vshrl.u32 2475754826, %v1445
    %v1449 = vor.u32 %v1447, %v1448
    %v1450 = vshll.u32 2475754826, %v1444
    %v1451 = vshrl.u32 2131351028, %v1445
    %v1452 = vor.u32 %v1450, %v1451
    %v1453 = vshll.u32 2131351028, %v1444
    %v1454 = vshrl.u32 2102212464, %v1445
    %v1455 = vor.u32 %v1453, %v1454
    %v1456 = vshll.u32 2102212464, %v1444
    %v1457 = vshrl.u32 920167782, %v1445
    %v1458 = vor.u32 %v1456, %v1457
    %v1459 = vshll.u32 920167782, %v1444
    %v1460 = vshrl.u32 1326507024, %v1445
    %v1461 = vor.u32 %v1459, %v1460
    %vm1462 = vcmp.lt.s32.totalorder %v1443, 1
    %vm1463 = vcmp.lt.s32.totalorder %v1443, 2
    %vm1464 = vcmp.lt.s32.totalorder %v1443, 3
    %vm1465 = vcmp.lt.s32.totalorder %v1443, 4
    %v1466 = vsel %vm1462, %v1446, %v1449
    %v1467 = vsel %vm1465, %v1455, 2102212464
    %v1468 = vsel %vm1464, %v1452, %v1467
    %v1469 = vsel %vm1463, %v1466, %v1468
    %v1470 = vsel %vm1462, %v1449, %v1452
    %v1471 = vsel %vm1465, %v1458, 920167782
    %v1472 = vsel %vm1464, %v1455, %v1471
    %v1473 = vsel %vm1463, %v1470, %v1472
    %v1474 = vsel %vm1462, %v1452, %v1455
    %v1475 = vsel %vm1465, %v1461, 1326507024
    %v1476 = vsel %vm1464, %v1458, %v1475
    %v1477 = vsel %vm1463, %v1474, %v1476
    %v1478 = vshll.u32 %v1438, 8
    %v1479 = vand.u32 %v1478, 65535
    %v1480 = vshrl.u32 %v1478, 16
    %v1481 = vand.u32 %v1477, 65535
    %v1482 = vshrl.u32 %v1477, 16
    %v1483 = vmul.u32 %v1479, %v1481
    %v1484 = vmul.u32 %v1479, %v1482
    %v1485 = vmul.u32 %v1480, %v1481
    %v1486 = vmul.u32 %v1480, %v1482
    %v1487 = vshll.u32 %v1484, 16
    %v1488 = vshrl.u32 %v1484, 16
    %v1489 = vshll.u32 %v1485, 16
    %v1490 = vshrl.u32 %v1485, 16
    %vm1491 = vc.u32 %v1483, %v1487
    %v1492 = vsel %vm1491, 1, 0
    %v1493 = vadd.s32 %v1483, %v1487
    %v1494 = vadd.s32 %v1486, %v1492
    %vm1495 = vc.u32 %v1493, %v1489
    %v1496 = vsel %vm1495, 1, 0
    %v1497 = vadd.s32 %v1493, %v1489
    %v1498 = vadd.s32 %v1494, %v1496
    %v1499 = vadd.s32 %v1498, %v1488
    %v1500 = vadd.s32 %v1499, %v1490
    %v1501 = vand.u32 %v1478, 65535
    %v1502 = vshrl.u32 %v1478, 16
    %v1503 = vand.u32 %v1473, 65535
    %v1504 = vshrl.u32 %v1473, 16
    %v1505 = vmul.u32 %v1501, %v1503
    %v1506 = vmul.u32 %v1501, %v1504
    %v1507 = vmul.u32 %v1502, %v1503
    %v1508 = vmul.u32 %v1502, %v1504
    %v1509 = vshll.u32 %v1506, 16
    %v1510 = vshrl.u32 %v1506, 16
    %v1511 = vshll.u32 %v1507, 16
    %v1512 = vshrl.u32 %v1507, 16
    %vm1513 = vc.u32 %v1505, %v1509
    %v1514 = vsel %vm1513, 1, 0
    %v1515 = vadd.s32 %v1505, %v1509
    %v1516 = vadd.s32 %v1508, %v1514
    %vm1517 = vc.u32 %v1515, %v1511
    %v1518 = vsel %vm1517, 1, 0
    %v1519 = vadd.s32 %v1515, %v1511
    %v1520 = vadd.s32 %v1516, %v1518
    %v1521 = vadd.s32 %v1520, %v1510
    %v1522 = vadd.s32 %v1521, %v1512
    %v1523 = vmul.u32 %v1478, %v1469
    %v1524 = vadd.s32 %v1500, %v1519
    %vm1525 = vc.u32 %v1500, %v1519
    %v1526 = vadd.s32 %v1522, 1
    %v1527 = vsel %vm1525, %v1526, %v1522
    %v1528 = vadd.s32 %v1523, %v1527
    %v1529 = vadd.s32 %v1528, 536870912
    %v1530 = vshrl.u32 %v1529, 30
    %v1531 = vshll.u32 %v1530, 30
    %v1532 = vsub.s32 %v1528, %v1531
    %vm1533 = vcmp.lt.s32.totalorder %v1532, 0
    %v1534 = vsub.s32 0, %v1532
    %v1535 = vsel %vm1533, %v1534, %v1532
    %v1536 = vclz %v1535
    %v1537 = vsub.s32 %v1536, 2
    %vm1538 = vcmp.gt.s32.totalorder 0, %v1537
    %v1539 = vsel %vm1538, 0, %v1537
    %v1540 = vsub.s32 32, %v1539
    %v1541 = vshll.u32 %v1532, %v1539
    %v1542 = vshrl.u32 %v1524, %v1540
    %v1543 = vor.u32 %v1541, %v1542
    %v1544 = vsub.s32 4294967266, %v1539
    %v1545 = vadd.s32 %v1544, 127
    %v1546 = vshll.u32 %v1545, 23
    %v1547 = vor.u32 4788187, %v1546
    %v1548 = vand.u32 2147483647, %v1547
    %v1550 = vcvt.s32.f32 %v1543
    %v1551 = vmul.f32 %v1550, %v1548
    %v1552 = vxor.u32 %v1551, 2147483648
    %v1553 = vsel %vm1432, %v1552, %v1551
    %v1554 = vsub.s32 4, %v1530
    %v1555 = vsel %vm1432, %v1554, %v1530
    %v1556 = vsel %vm1431, %v1273, %v1553
    %v1557 = vsel %vm1431, 0, %v1555
    %v1558 = vmul.f32 %v1556, %v1556
    %v1559 = vmul.f32 %v1558, -0.001358992
    %v1560 = vadd.f32 %v1559, 0.041655596
    %v1561 = vmul.f32 %v1558, %v1560
    %v1562 = vadd.f32 %v1561, -0.4999988
    %v1563 = vmul.f32 %v1558, %v1562
    %v1564 = vadd.f32 1.0, %v1563
    %v1565 = vmul.f32 %v1556, %v1556
    %v1566 = vmul.f32 %v1565, -0.00019511016
    %v1567 = vadd.f32 %v1566, 0.008332121
    %v1568 = vmul.f32 %v1565, %v1567
    %v1569 = vadd.f32 %v1568, -0.16666654
    %v1570 = vmul.f32 %v1565, %v1569
    %v1571 = vadd.f32 %v1570, 1.0
    %v1572 = vmul.f32 %v1571, %v1556
    %vm1573 = vweird.f32 %v1273
    %v1574 = vand.u32 %v1557, 3
    %vm1575 = vcmp.lt.s32.totalorder %v1574, 2
    %vm1576 = vcmp.eq.s32.totalorder %v1574, 0
    %v1577 = vxor.u32 %v1572, 2147483648
    %v1578 = vsel %vm1576, %v1564, %v1577
    %vm1579 = vcmp.eq.s32.totalorder %v1574, 2
    %v1580 = vxor.u32 %v1564, 2147483648
    %v1581 = vsel %vm1579, %v1580, %v1572
    %v1582 = vsel %vm1575, %v1578, %v1581
    %v1583 = vsel %vm1573, nan, %v1582
    %1584 = vst [vmem:[#allocation5 + $0x21] sm:$0x7] %v1583
    %v1585 = vmul.f32 %v23, 6.0
    %v1586 = vand.u32 2147483647, %v1585
    %vm1587 = vcmp.le.f32.partialorder %v1586, 0.7853982
    %vm1588 = vcmp.lt.s32.totalorder %v1585, 0
    %v1589 = vand.u32 %v1585, 2139095040
    %v1590 = vshrl.u32 %v1589, 23
    %v1591 = vsub.s32 %v1590, 127
    %v1592 = vand.u32 2147483647, %v1585
    %v1593 = vand.u32 %v1592, 8388607
    %v1594 = vor.u32 %v1593, 8388608
    %v1595 = vsub.s32 0, %v1594
    %v1596 = vadd.s32 %v1591, 1
    %vm1597 = vcmp.gt.s32.totalorder %v1596, 0
    %v1598 = vsel %vm1597, %v1596, 0
    %v1599 = vshrl.u32 %v1598, 5
    %v1600 = vand.u32 %v1598, 31
    %v1601 = vsub.s32 32, %v1600
    %v1602 = vshrl.u32 683565275, %v1601
    %v1603 = vshll.u32 683565275, %v1600
    %v1604 = vshrl.u32 2475754826, %v1601
    %v1605 = vor.u32 %v1603, %v1604
    %v1606 = vshll.u32 2475754826, %v1600
    %v1607 = vshrl.u32 2131351028, %v1601
    %v1608 = vor.u32 %v1606, %v1607
    %v1609 = vshll.u32 2131351028, %v1600
    %v1610 = vshrl.u32 2102212464, %v1601
    %v1611 = vor.u32 %v1609, %v1610
    %v1612 = vshll.u32 2102212464, %v1600
    %v1613 = vshrl.u32 920167782, %v1601
    %v1614 = vor.u32 %v1612, %v1613
    %v1615 = vshll.u32 920167782, %v1600
    %v1616 = vshrl.u32 1326507024, %v1601
    %v1617 = vor.u32 %v1615, %v1616
    %vm1618 = vcmp.lt.s32.totalorder %v1599, 1
    %vm1619 = vcmp.lt.s32.totalorder %v1599, 2
    %vm1620 = vcmp.lt.s32.totalorder %v1599, 3
    %vm1621 = vcmp.lt.s32.totalorder %v1599, 4
    %v1622 = vsel %vm1618, %v1602, %v1605
    %v1623 = vsel %vm1621, %v1611, 2102212464
    %v1624 = vsel %vm1620, %v1608, %v1623
    %v1625 = vsel %vm1619, %v1622, %v1624
    %v1626 = vsel %vm1618, %v1605, %v1608
    %v1627 = vsel %vm1621, %v1614, 920167782
    %v1628 = vsel %vm1620, %v1611, %v1627
    %v1629 = vsel %vm1619, %v1626, %v1628
    %v1630 = vsel %vm1618, %v1608, %v1611
    %v1631 = vsel %vm1621, %v1617, 1326507024
    %v1632 = vsel %vm1620, %v1614, %v1631
    %v1633 = vsel %vm1619, %v1630, %v1632
    %v1634 = vshll.u32 %v1594, 8
    %v1635 = vand.u32 %v1634, 65535
    %v1636 = vshrl.u32 %v1634, 16
    %v1637 = vand.u32 %v1633, 65535
    %v1638 = vshrl.u32 %v1633, 16
    %v1639 = vmul.u32 %v1635, %v1637
    %v1640 = vmul.u32 %v1635, %v1638
    %v1641 = vmul.u32 %v1636, %v1637
    %v1642 = vmul.u32 %v1636, %v1638
    %v1643 = vshll.u32 %v1640, 16
    %v1644 = vshrl.u32 %v1640, 16
    %v1645 = vshll.u32 %v1641, 16
    %v1646 = vshrl.u32 %v1641, 16
    %vm1647 = vc.u32 %v1639, %v1643
    %v1648 = vsel %vm1647, 1, 0
    %v1649 = vadd.s32 %v1639, %v1643
    %v1650 = vadd.s32 %v1642, %v1648
    %vm1651 = vc.u32 %v1649, %v1645
    %v1652 = vsel %vm1651, 1, 0
    %v1653 = vadd.s32 %v1649, %v1645
    %v1654 = vadd.s32 %v1650, %v1652
    %v1655 = vadd.s32 %v1654, %v1644
    %v1656 = vadd.s32 %v1655, %v1646
    %v1657 = vand.u32 %v1634, 65535
    %v1658 = vshrl.u32 %v1634, 16
    %v1659 = vand.u32 %v1629, 65535
    %v1660 = vshrl.u32 %v1629, 16
    %v1661 = vmul.u32 %v1657, %v1659
    %v1662 = vmul.u32 %v1657, %v1660
    %v1663 = vmul.u32 %v1658, %v1659
    %v1664 = vmul.u32 %v1658, %v1660
    %v1665 = vshll.u32 %v1662, 16
    %v1666 = vshrl.u32 %v1662, 16
    %v1667 = vshll.u32 %v1663, 16
    %v1668 = vshrl.u32 %v1663, 16
    %vm1669 = vc.u32 %v1661, %v1665
    %v1670 = vsel %vm1669, 1, 0
    %v1671 = vadd.s32 %v1661, %v1665
    %v1672 = vadd.s32 %v1664, %v1670
    %vm1673 = vc.u32 %v1671, %v1667
    %v1674 = vsel %vm1673, 1, 0
    %v1675 = vadd.s32 %v1671, %v1667
    %v1676 = vadd.s32 %v1672, %v1674
    %v1677 = vadd.s32 %v1676, %v1666
    %v1678 = vadd.s32 %v1677, %v1668
    %v1679 = vmul.u32 %v1634, %v1625
    %v1680 = vadd.s32 %v1656, %v1675
    %vm1681 = vc.u32 %v1656, %v1675
    %v1682 = vadd.s32 %v1678, 1
    %v1683 = vsel %vm1681, %v1682, %v1678
    %v1684 = vadd.s32 %v1679, %v1683
    %v1685 = vadd.s32 %v1684, 536870912
    %v1686 = vshrl.u32 %v1685, 30
    %v1687 = vshll.u32 %v1686, 30
    %v1688 = vsub.s32 %v1684, %v1687
    %vm1689 = vcmp.lt.s32.totalorder %v1688, 0
    %v1690 = vsub.s32 0, %v1688
    %v1691 = vsel %vm1689, %v1690, %v1688
    %v1692 = vclz %v1691
    %v1693 = vsub.s32 %v1692, 2
    %vm1694 = vcmp.gt.s32.totalorder 0, %v1693
    %v1695 = vsel %vm1694, 0, %v1693
    %v1696 = vsub.s32 32, %v1695
    %v1697 = vshll.u32 %v1688, %v1695
    %v1698 = vshrl.u32 %v1680, %v1696
    %v1699 = vor.u32 %v1697, %v1698
    %v1700 = vsub.s32 4294967266, %v1695
    %v1701 = vadd.s32 %v1700, 127
    %v1702 = vshll.u32 %v1701, 23
    %v1703 = vor.u32 4788187, %v1702
    %v1704 = vand.u32 2147483647, %v1703
    %v1706 = vcvt.s32.f32 %v1699
    %v1707 = vmul.f32 %v1706, %v1704
    %v1708 = vxor.u32 %v1707, 2147483648
    %v1709 = vsel %vm1588, %v1708, %v1707
    %v1710 = vsub.s32 4, %v1686
    %v1711 = vsel %vm1588, %v1710, %v1686
    %v1712 = vsel %vm1587, %v1585, %v1709
    %v1713 = vsel %vm1587, 0, %v1711
    %v1714 = vmul.f32 %v1712, %v1712
    %v1715 = vmul.f32 %v1714, -0.001358992
    %v1716 = vadd.f32 %v1715, 0.041655596
    %v1717 = vmul.f32 %v1714, %v1716
    %v1718 = vadd.f32 %v1717, -0.4999988
    %v1719 = vmul.f32 %v1714, %v1718
    %v1720 = vadd.f32 1.0, %v1719
    %v1721 = vmul.f32 %v1712, %v1712
    %v1722 = vmul.f32 %v1721, -0.00019511016
    %v1723 = vadd.f32 %v1722, 0.008332121
    %v1724 = vmul.f32 %v1721, %v1723
    %v1725 = vadd.f32 %v1724, -0.16666654
    %v1726 = vmul.f32 %v1721, %v1725
    %v1727 = vadd.f32 %v1726, 1.0
    %v1728 = vmul.f32 %v1727, %v1712
    %vm1729 = vweird.f32 %v1585
    %v1730 = vadd.s32 %v1713, 3
    %v1731 = vand.u32 %v1730, 3
    %vm1732 = vcmp.lt.s32.totalorder %v1731, 2
    %vm1733 = vcmp.eq.s32.totalorder %v1731, 0
    %v1734 = vxor.u32 %v1728, 2147483648
    %v1735 = vsel %vm1733, %v1720, %v1734
    %vm1736 = vcmp.eq.s32.totalorder %v1731, 2
    %v1737 = vxor.u32 %v1720, 2147483648
    %v1738 = vsel %vm1736, %v1737, %v1728
    %v1739 = vsel %vm1732, %v1735, %v1738
    %v1740 = vsel %vm1729, nan, %v1739
    %1741 = vst [vmem:[#allocation5 + $0x24] sm:$0x7] %v1740
    %v1742 = vand.u32 2147483647, %v1585
    %vm1743 = vcmp.le.f32.partialorder %v1742, 0.7853982
    %vm1744 = vcmp.lt.s32.totalorder %v1585, 0
    %v1745 = vand.u32 %v1585, 2139095040
    %v1746 = vshrl.u32 %v1745, 23
    %v1747 = vsub.s32 %v1746, 127
    %v1748 = vand.u32 2147483647, %v1585
    %v1749 = vand.u32 %v1748, 8388607
    %v1750 = vor.u32 %v1749, 8388608
    %v1751 = vsub.s32 0, %v1750
    %v1752 = vadd.s32 %v1747, 1
    %vm1753 = vcmp.gt.s32.totalorder %v1752, 0
    %v1754 = vsel %vm1753, %v1752, 0
    %v1755 = vshrl.u32 %v1754, 5
    %v1756 = vand.u32 %v1754, 31
    %v1757 = vsub.s32 32, %v1756
    %v1758 = vshrl.u32 683565275, %v1757
    %v1759 = vshll.u32 683565275, %v1756
    %v1760 = vshrl.u32 2475754826, %v1757
    %v1761 = vor.u32 %v1759, %v1760
    %v1762 = vshll.u32 2475754826, %v1756
    %v1763 = vshrl.u32 2131351028, %v1757
    %v1764 = vor.u32 %v1762, %v1763
    %v1765 = vshll.u32 2131351028, %v1756
    %v1766 = vshrl.u32 2102212464, %v1757
    %v1767 = vor.u32 %v1765, %v1766
    %v1768 = vshll.u32 2102212464, %v1756
    %v1769 = vshrl.u32 920167782, %v1757
    %v1770 = vor.u32 %v1768, %v1769
    %v1771 = vshll.u32 920167782, %v1756
    %v1772 = vshrl.u32 1326507024, %v1757
    %v1773 = vor.u32 %v1771, %v1772
    %vm1774 = vcmp.lt.s32.totalorder %v1755, 1
    %vm1775 = vcmp.lt.s32.totalorder %v1755, 2
    %vm1776 = vcmp.lt.s32.totalorder %v1755, 3
    %vm1777 = vcmp.lt.s32.totalorder %v1755, 4
    %v1778 = vsel %vm1774, %v1758, %v1761
    %v1779 = vsel %vm1777, %v1767, 2102212464
    %v1780 = vsel %vm1776, %v1764, %v1779
    %v1781 = vsel %vm1775, %v1778, %v1780
    %v1782 = vsel %vm1774, %v1761, %v1764
    %v1783 = vsel %vm1777, %v1770, 920167782
    %v1784 = vsel %vm1776, %v1767, %v1783
    %v1785 = vsel %vm1775, %v1782, %v1784
    %v1786 = vsel %vm1774, %v1764, %v1767
    %v1787 = vsel %vm1777, %v1773, 1326507024
    %v1788 = vsel %vm1776, %v1770, %v1787
    %v1789 = vsel %vm1775, %v1786, %v1788
    %v1790 = vshll.u32 %v1750, 8
    %v1791 = vand.u32 %v1790, 65535
    %v1792 = vshrl.u32 %v1790, 16
    %v1793 = vand.u32 %v1789, 65535
    %v1794 = vshrl.u32 %v1789, 16
    %v1795 = vmul.u32 %v1791, %v1793
    %v1796 = vmul.u32 %v1791, %v1794
    %v1797 = vmul.u32 %v1792, %v1793
    %v1798 = vmul.u32 %v1792, %v1794
    %v1799 = vshll.u32 %v1796, 16
    %v1800 = vshrl.u32 %v1796, 16
    %v1801 = vshll.u32 %v1797, 16
    %v1802 = vshrl.u32 %v1797, 16
    %vm1803 = vc.u32 %v1795, %v1799
    %v1804 = vsel %vm1803, 1, 0
    %v1805 = vadd.s32 %v1795, %v1799
    %v1806 = vadd.s32 %v1798, %v1804
    %vm1807 = vc.u32 %v1805, %v1801
    %v1808 = vsel %vm1807, 1, 0
    %v1809 = vadd.s32 %v1805, %v1801
    %v1810 = vadd.s32 %v1806, %v1808
    %v1811 = vadd.s32 %v1810, %v1800
    %v1812 = vadd.s32 %v1811, %v1802
    %v1813 = vand.u32 %v1790, 65535
    %v1814 = vshrl.u32 %v1790, 16
    %v1815 = vand.u32 %v1785, 65535
    %v1816 = vshrl.u32 %v1785, 16
    %v1817 = vmul.u32 %v1813, %v1815
    %v1818 = vmul.u32 %v1813, %v1816
    %v1819 = vmul.u32 %v1814, %v1815
    %v1820 = vmul.u32 %v1814, %v1816
    %v1821 = vshll.u32 %v1818, 16
    %v1822 = vshrl.u32 %v1818, 16
    %v1823 = vshll.u32 %v1819, 16
    %v1824 = vshrl.u32 %v1819, 16
    %vm1825 = vc.u32 %v1817, %v1821
    %v1826 = vsel %vm1825, 1, 0
    %v1827 = vadd.s32 %v1817, %v1821
    %v1828 = vadd.s32 %v1820, %v1826
    %vm1829 = vc.u32 %v1827, %v1823
    %v1830 = vsel %vm1829, 1, 0
    %v1831 = vadd.s32 %v1827, %v1823
    %v1832 = vadd.s32 %v1828, %v1830
    %v1833 = vadd.s32 %v1832, %v1822
    %v1834 = vadd.s32 %v1833, %v1824
    %v1835 = vmul.u32 %v1790, %v1781
    %v1836 = vadd.s32 %v1812, %v1831
    %vm1837 = vc.u32 %v1812, %v1831
    %v1838 = vadd.s32 %v1834, 1
    %v1839 = vsel %vm1837, %v1838, %v1834
    %v1840 = vadd.s32 %v1835, %v1839
    %v1841 = vadd.s32 %v1840, 536870912
    %v1842 = vshrl.u32 %v1841, 30
    %v1843 = vshll.u32 %v1842, 30
    %v1844 = vsub.s32 %v1840, %v1843
    %vm1845 = vcmp.lt.s32.totalorder %v1844, 0
    %v1846 = vsub.s32 0, %v1844
    %v1847 = vsel %vm1845, %v1846, %v1844
    %v1848 = vclz %v1847
    %v1849 = vsub.s32 %v1848, 2
    %vm1850 = vcmp.gt.s32.totalorder 0, %v1849
    %v1851 = vsel %vm1850, 0, %v1849
    %v1852 = vsub.s32 32, %v1851
    %v1853 = vshll.u32 %v1844, %v1851
    %v1854 = vshrl.u32 %v1836, %v1852
    %v1855 = vor.u32 %v1853, %v1854
    %v1856 = vsub.s32 4294967266, %v1851
    %v1857 = vadd.s32 %v1856, 127
    %v1858 = vshll.u32 %v1857, 23
    %v1859 = vor.u32 4788187, %v1858
    %v1860 = vand.u32 2147483647, %v1859
    %v1862 = vcvt.s32.f32 %v1855
    %v1863 = vmul.f32 %v1862, %v1860
    %v1864 = vxor.u32 %v1863, 2147483648
    %v1865 = vsel %vm1744, %v1864, %v1863
    %v1866 = vsub.s32 4, %v1842
    %v1867 = vsel %vm1744, %v1866, %v1842
    %v1868 = vsel %vm1743, %v1585, %v1865
    %v1869 = vsel %vm1743, 0, %v1867
    %v1870 = vmul.f32 %v1868, %v1868
    %v1871 = vmul.f32 %v1870, -0.001358992
    %v1872 = vadd.f32 %v1871, 0.041655596
    %v1873 = vmul.f32 %v1870, %v1872
    %v1874 = vadd.f32 %v1873, -0.4999988
    %v1875 = vmul.f32 %v1870, %v1874
    %v1876 = vadd.f32 1.0, %v1875
    %v1877 = vmul.f32 %v1868, %v1868
    %v1878 = vmul.f32 %v1877, -0.00019511016
    %v1879 = vadd.f32 %v1878, 0.008332121
    %v1880 = vmul.f32 %v1877, %v1879
    %v1881 = vadd.f32 %v1880, -0.16666654
    %v1882 = vmul.f32 %v1877, %v1881
    %v1883 = vadd.f32 %v1882, 1.0
    %v1884 = vmul.f32 %v1883, %v1868
    %vm1885 = vweird.f32 %v1585
    %v1886 = vand.u32 %v1869, 3
    %vm1887 = vcmp.lt.s32.totalorder %v1886, 2
    %vm1888 = vcmp.eq.s32.totalorder %v1886, 0
    %v1889 = vxor.u32 %v1884, 2147483648
    %v1890 = vsel %vm1888, %v1876, %v1889
    %vm1891 = vcmp.eq.s32.totalorder %v1886, 2
    %v1892 = vxor.u32 %v1876, 2147483648
    %v1893 = vsel %vm1891, %v1892, %v1884
    %v1894 = vsel %vm1887, %v1890, %v1893
    %v1895 = vsel %vm1885, nan, %v1894
    %1896 = vst [vmem:[#allocation5 + $0x27] sm:$0x7] %v1895
    // Predicated region
    $region10: #{tpu_custom_call.1} parent=1 // pred_check
      _
    $region11: #{tpu_custom_call.1} parent=1 // pred_check_branch
      %1898 = sbr.rel (0) target = $region13
    $region12: #{tpu_custom_call.1} parent=1 // pred_region
      %1900 = vsyncadd [#allocation4], 0
      %s1901 = sshll.u32 [#allocation5], 4
      %s1902 = int_to_ptr.vmem [resolvable:$true] %s1901
      %s1903 = sshll.u32 %s1, 4
      %s1904 = int_to_ptr.hbm [resolvable:$true] %s1903
      %1909 = dma.vmem_to_hbm [thread:$0]  %s1902, 768, %s1904, [#allocation4], 128, 128, 8
    $region13: #{tpu_custom_call.1} parent=1 // pred_fallthru
      _
    // Predicated region
    $region14: #{tpu_custom_call.1} parent=1 // pred_check
      _
    $region15: #{tpu_custom_call.1} parent=1 // pred_check_branch
      %1911 = sbr.rel (0) target = $region17
    $region16: #{tpu_custom_call.1} parent=1 // pred_region
      %1913 = dma.done [#allocation4], 768
    $region17: #{tpu_custom_call.1} parent=1 // pred_fallthru
      _
    %1914 = vsyncpa [#allocation3], 1
    %1915 = vsyncpa [#allocation4], 1

</llo_original>
